<compile_context>
chip_gen: v7x
topology: tpu7x:2x2x1
jax: 0.10.0
libtpu: 0.0.40
codegen_flags: <defaults>
</compile_context>

<pallas_src>
import functools

import jax
import jax.numpy as jnp
from jax import lax
from jax.experimental import pallas as pl
from jax.experimental.pallas import tpu as pltpu


def _focal_loss_tile_kernel(logits_ref, tgt_ref, part_ref, *, gamma, n_rows, tile_n):
    """One grid step: focal loss over a (TILE_N, C) logits tile -> scalar partial sum."""
    i = pl.program_id(0)

    x = logits_ref[...].astype(jnp.float32)              # (TILE_N, C)  cast in-VMEM only
    t = tgt_ref[...]                                      # (TILE_N, 1)  int32
    c = x.shape[-1]

    # Per-row max: the only cross-lane (XLU) reduction kept in the kernel.
    m = jnp.max(x, axis=-1, keepdims=True)                # (TILE_N, 1)
    shifted = x - m                                       # (TILE_N, C)
    e = jnp.exp(shifted)                                  # (TILE_N, C)

    # Target-class gather via one-hot compare (no dynamic gather on TPU).
    col = lax.broadcasted_iota(jnp.int32, x.shape, 1)     # (TILE_N, C)
    masked = jnp.where(col == t, shifted, 0.0)            # (TILE_N, C)

    # Lane-sum reductions offloaded to the idle MXU instead of the XLU: every output
    # lane of the ones-matmul holds the row sum; take lane 0.  HIGHEST precision keeps
    # full f32 accuracy (default would demote f32 operands to bf16 passes).
    ones = jnp.ones((c, 128), dtype=jnp.float32)
    sumexp = jnp.dot(e, ones, preferred_element_type=jnp.float32,
                     precision=lax.Precision.HIGHEST)[:, :1]        # (TILE_N, 1)
    tgt_logit = jnp.dot(masked, ones, preferred_element_type=jnp.float32,
                        precision=lax.Precision.HIGHEST)[:, :1]     # (TILE_N, 1)

    # Per-sample cross entropy + focal re-weighting.
    ce = jnp.log(sumexp) - tgt_logit                      # (TILE_N, 1)
    pt = jnp.exp(-ce)
    one_minus_pt = 1.0 - pt

    g_int = int(gamma)
    if float(gamma) == float(g_int) and 1 <= g_int <= 8:
        # Integer gamma: (g-1) VPU multiplies (free slots) instead of float pow
        # (which lowers to log+exp on the single EUP).
        w = one_minus_pt
        for _ in range(g_int - 1):
            w = w * one_minus_pt
    elif float(gamma) == 0.0:
        w = jnp.ones_like(one_minus_pt)
    else:
        w = one_minus_pt ** jnp.float32(gamma)
    focal = w * ce                                        # (TILE_N, 1)

    # Mask rows past the true N (padded rows of the last tile) BEFORE the only
    # cross-row sum, so padded-row garbage never reaches the result.
    row = i * tile_n + lax.broadcasted_iota(jnp.int32, focal.shape, 0)
    focal = jnp.where(row < n_rows, focal, 0.0)

    part = jnp.sum(focal)                                 # scalar partial for this tile
    part_ref[...] = jnp.full(part_ref.shape, part, dtype=jnp.float32)


def _sublane_multiple(itemsize):
    # Sub-32-bit dtypes pack along sublanes: f32 -> 8 rows/vreg, bf16 -> 16, int8 -> 32.
    return {4: 8, 2: 16, 1: 32}.get(int(itemsize), 8)


def _vmem_capacity_bytes():
    # Generation-aware budget: v5e/v6e have 128 MiB VMEM, v7x has 64 MiB per TensorCore.
    try:
        return int(pltpu.get_tpu_info().vmem_capacity_bytes)
    except Exception:
        return 64 * 1024 * 1024          # conservative (v7x-sized) fallback


def focal_loss(logits, targets, gamma=2.0, reduction="mean", tile_n=None):
    """Focal loss matching FocalLoss.forward (weight=None).

    logits: (N, C) float (f32 or bf16); targets: (N,) int class indices.
    `gamma` must be a static Python number (it is baked into the kernel).
    Returns a scalar f32 for reduction in {'mean', 'sum'}.
    """
    if reduction not in ("mean", "sum"):
        # TODO(synk): reduction='none' (per-sample output) and per-class `weight`
        # are not implemented in the kernel path (module defaults are covered).
        raise ValueError("only 'mean' / 'sum' reductions implemented in this kernel")
    gamma = float(gamma)   # raises on traced values -> gamma must be static

    n, c = logits.shape
    itemsize = jnp.dtype(logits.dtype).itemsize
    tgt = targets.astype(jnp.int32).reshape(n, 1)

    lane_c = max(128, pl.cdiv(c, 128) * 128)              # lanes pad to 128
    sub = _sublane_multiple(itemsize)

    # Per-row VMEM cost:
    #   2 pipeline buffers x (logits row + lane-padded (.,1) int32 target row)   [inputs]
    #   + ~8 f32 rows of in-kernel temporaries (x_f32, shifted, exp, onehot, masked,
    #     two 128-wide matmul results, slack).
    in_row_bytes = lane_c * itemsize + 128 * 4
    tmp_row_bytes = 8 * lane_c * 4
    per_row_bytes = 2 * in_row_bytes + tmp_row_bytes
    ones_bytes = pl.cdiv(c, 8) * 8 * 128 * 4              # in-kernel ones RHS

    cap = _vmem_capacity_bytes()
    if tile_n is None:
        # v5e/v6e (128 MiB VMEM): generous budget; v7x (64 MiB/TC): conservative.
        target = 48 * 1024 * 1024 if cap >= 100 * 1024 * 1024 else 28 * 1024 * 1024
        usable = max(4 * 1024 * 1024, target - ones_bytes)
        tile_n = max(sub, min(8192, (usable // per_row_bytes // sub) * sub))
    tile_n = int(min(tile_n, max(sub, pl.cdiv(n, sub) * sub)))   # never bigger than padded N
    num_tiles = pl.cdiv(n, tile_n)

    # Scoped-VMEM request: inputs + in-kernel temporaries + ones RHS + output blocks
    # + headroom.  Never clamp below the real need; cap at ~90% of physical VMEM.
    needed = per_row_bytes * tile_n + ones_bytes + 2 * (8 * 128 * 4) + (2 << 20)
    vmem_limit = int(min(max(needed, 8 * 1024 * 1024), int(cap * 0.9)))

    cost = pl.CostEstimate(
        flops=8 * n * c,                                   # 2 ones-matmuls + elementwise
        transcendentals=n * c + 2 * n,                     # exp(shifted), exp(-ce), log(lse)
        bytes_accessed=n * c * itemsize + n * 4 + num_tiles * 8 * 128 * 4,
    )

    partials = pl.pallas_call(
        functools.partial(_focal_loss_tile_kernel, gamma=gamma, n_rows=n, tile_n=tile_n),
        grid=(num_tiles,),
        in_specs=[
            pl.BlockSpec((tile_n, c), lambda i: (i, 0)),   # logits tile (auto double-buffered)
            pl.BlockSpec((tile_n, 1), lambda i: (i, 0)),   # targets tile (lane-pads to 128)
        ],
        # Lane-dense (8,128) per-tile partial block -> grid steps stay independent.
        out_specs=pl.BlockSpec((1, 8, 128), lambda i: (i, 0, 0)),
        out_shape=jax.ShapeDtypeStruct((num_tiles, 8, 128), jnp.float32),
        compiler_params=pltpu.CompilerParams(
            dimension_semantics=("parallel",),             # megacore / 2-TC friendly
            vmem_limit_bytes=vmem_limit,
        ),
        cost_estimate=cost,
    )(logits, tgt)

    total = jnp.sum(partials[:, 0, 0])
    if reduction == "mean":
        return total / jnp.float32(n)
    return total


def _reference(logits, targets, gamma=2.0, reduction="mean"):
    # Pure-JAX reference mirroring F.cross_entropy(reduction='none') + focal weighting.
    logp = jax.nn.log_softmax(logits.astype(jnp.float32), axis=-1)
    ce = -jnp.take_along_axis(logp, targets[:, None].astype(jnp.int32), axis=-1)[:, 0]
    pt = jnp.exp(-ce)
    fl = (1.0 - pt) ** gamma * ce
    return jnp.mean(fl) if reduction == "mean" else jnp.sum(fl)


if __name__ == "__main__":
    key = jax.random.PRNGKey(0)
    k1, k2, k3, k4, k5, k6 = jax.random.split(key, 6)

    # Case 1: f32, N divisible by the tile -> several independent parallel tiles.
    N1, C1 = 512, 128
    logits1 = jax.random.normal(k1, (N1, C1), dtype=jnp.float32)
    targets1 = jax.random.randint(k2, (N1,), 0, C1, dtype=jnp.int32)
    loss1 = jax.block_until_ready(
        focal_loss(logits1, targets1, gamma=2.0, reduction="mean", tile_n=128))
    ref1 = _reference(logits1, targets1, gamma=2.0, reduction="mean")
    assert jnp.allclose(loss1, ref1, atol=1e-5, rtol=1e-4), (loss1, ref1)

    # Case 2: f32, N not divisible by the tile -> tail-row masking path, auto tile size.
    N2, C2 = 500, 128
    logits2 = jax.random.normal(k3, (N2, C2), dtype=jnp.float32)
    targets2 = jax.random.randint(k4, (N2,), 0, C2, dtype=jnp.int32)
    loss2 = jax.block_until_ready(
        focal_loss(logits2, targets2, gamma=2.0, reduction="sum"))
    ref2 = _reference(logits2, targets2, gamma=2.0, reduction="sum")
    assert jnp.allclose(loss2, ref2, atol=1e-4, rtol=1e-4), (loss2, ref2)

    # Case 3: bf16 logits, small C (< 128 lanes) -> bf16-across-HBM + in-kernel f32 cast.
    N3, C3 = 192, 16
    logits3 = jax.random.normal(k5, (N3, C3), dtype=jnp.float32).astype(jnp.bfloat16)
    targets3 = jax.random.randint(k6, (N3,), 0, C3, dtype=jnp.int32)
    loss3 = jax.block_until_ready(
        focal_loss(logits3, targets3, gamma=2.0, reduction="mean"))
    ref3 = _reference(logits3, targets3, gamma=2.0, reduction="mean")
    assert jnp.allclose(loss3, ref3, atol=1e-5, rtol=1e-4), (loss3, ref3)

    print("KERNEL_OK")
</pallas_src>

<mosaic_0001>
module attributes {stable_mosaic.version = 11 : i64} {
  func.func @_focal_loss_tile_kernel(%arg0: i32, %arg1: memref<128x128xf32, #tpu.memory_space<vmem>>, %arg2: memref<128x1xi32, #tpu.memory_space<vmem>>, %arg3: memref<1x8x128xf32, #tpu.memory_space<vmem>>) attributes {dimension_semantics = [#tpu.dimension_semantics<parallel>], iteration_bounds = array<i64: 4>, scalar_prefetch = 0 : i64, scratch_operands = 0 : i64, tpu.core_type = #tpu.core_type<tc>, window_params = [{transform_indices = @transform_0, window_bounds = array<i64: 128, 128>}, {transform_indices = @transform_1, window_bounds = array<i64: 128, 1>}, {transform_indices = @transform_2, window_bounds = array<i64: 1, 8, 128>}]} {
    %c0 = arith.constant 0 : index
    %c0_0 = arith.constant 0 : index
    %0 = vector.load %arg1[%c0, %c0_0] : memref<128x128xf32, #tpu.memory_space<vmem>>, vector<128x128xf32>
    %c0_1 = arith.constant 0 : index
    %c0_2 = arith.constant 0 : index
    %1 = vector.load %arg2[%c0_1, %c0_2] : memref<128x1xi32, #tpu.memory_space<vmem>>, vector<128x1xi32>
    %cst = arith.constant dense<0xFF800000> : vector<128xf32>
    %2 = vector.multi_reduction <maximumf>, %0, %cst [1] : vector<128x128xf32> to vector<128xf32>
    %3 = vector.shape_cast %2 : vector<128xf32> to vector<128x1xf32>
    %4 = vector.broadcast %3 : vector<128x1xf32> to vector<128x128xf32>
    %5 = arith.subf %0, %4 : vector<128x128xf32>
    %6 = math.exp %5 : vector<128x128xf32>
    %7 = tpu.iota {dimensions = array<i32: 1>} : vector<128x128xi32>
    %8 = vector.broadcast %1 : vector<128x1xi32> to vector<128x128xi32>
    %9 = arith.cmpi eq, %7, %8 : vector<128x128xi32>
    %cst_3 = arith.constant 0.000000e+00 : f32
    %10 = vector.broadcast %cst_3 : f32 to vector<128x128xf32>
    %11 = arith.select %9, %5, %10 : vector<128x128xi1>, vector<128x128xf32>
    %cst_4 = arith.constant 1.000000e+00 : f32
    %12 = vector.broadcast %cst_4 : f32 to vector<128x128xf32>
    %cst_5 = arith.constant dense<0.000000e+00> : vector<128x128xf32>
    %13 = tpu.matmul %6, %12, %cst_5 {dimension_numbers = #tpu.dot_dimension_numbers<[1], [0], [0], [1], [0, 0, 1, 1], [], []>, precision = #tpu.contract_precision<fp32>} : vector<128x128xf32>, vector<128x128xf32>, vector<128x128xf32> -> vector<128x128xf32>
    %14 = vector.extract_strided_slice %13 {offsets = [0, 0], sizes = [128, 1], strides = [1, 1]} : vector<128x128xf32> to vector<128x1xf32>
    %cst_6 = arith.constant dense<0.000000e+00> : vector<128x128xf32>
    %15 = tpu.matmul %11, %12, %cst_6 {dimension_numbers = #tpu.dot_dimension_numbers<[1], [0], [0], [1], [0, 0, 1, 1], [], []>, precision = #tpu.contract_precision<fp32>} : vector<128x128xf32>, vector<128x128xf32>, vector<128x128xf32> -> vector<128x128xf32>
    %16 = vector.extract_strided_slice %15 {offsets = [0, 0], sizes = [128, 1], strides = [1, 1]} : vector<128x128xf32> to vector<128x1xf32>
    %17 = math.log %14 : vector<128x1xf32>
    %18 = arith.subf %17, %16 : vector<128x1xf32>
    %cst_7 = arith.constant 0.000000e+00 : f32
    %19 = vector.broadcast %cst_7 : f32 to vector<128x1xf32>
    %20 = arith.subf %19, %18 : vector<128x1xf32>
    %21 = math.exp %20 : vector<128x1xf32>
    %cst_8 = arith.constant 1.000000e+00 : f32
    %22 = vector.broadcast %cst_8 : f32 to vector<128x1xf32>
    %23 = arith.subf %22, %21 : vector<128x1xf32>
    %24 = arith.mulf %23, %23 : vector<128x1xf32>
    %25 = arith.mulf %24, %18 : vector<128x1xf32>
    %c128_i32 = arith.constant 128 : i32
    %26 = arith.muli %arg0, %c128_i32 : i32
    %27 = tpu.iota {dimensions = array<i32: 0>} : vector<128x1xi32>
    %28 = vector.broadcast %26 : i32 to vector<128x1xi32>
    %29 = arith.addi %28, %27 : vector<128x1xi32>
    %c512_i32 = arith.constant 512 : i32
    %30 = vector.broadcast %c512_i32 : i32 to vector<128x1xi32>
    %31 = arith.cmpi slt, %29, %30 : vector<128x1xi32>
    %cst_9 = arith.constant 0.000000e+00 : f32
    %32 = vector.broadcast %cst_9 : f32 to vector<128x1xf32>
    %33 = arith.select %31, %25, %32 : vector<128x1xi1>, vector<128x1xf32>
    %34 = vector.shape_cast %33 : vector<128x1xf32> to vector<1x128x1xf32>
    %cst_10 = arith.constant dense<0.000000e+00> : vector<1xf32>
    %35 = vector.multi_reduction <add>, %34, %cst_10 [1, 2] : vector<1x128x1xf32> to vector<1xf32>
    %36 = vector.shape_cast %35 : vector<1xf32> to vector<1x1x1xf32>
    %37 = vector.extract %36[0, 0, 0] : f32 from vector<1x1x1xf32>
    %38 = vector.broadcast %37 : f32 to vector<1x8x128xf32>
    %c0_11 = arith.constant 0 : index
    %c0_12 = arith.constant 0 : index
    %c0_13 = arith.constant 0 : index
    %39 = vector.load %arg3[%c0_11, %c0_12, %c0_13] : memref<1x8x128xf32, #tpu.memory_space<vmem>>, vector<1x8x128xf32>
    tpu.vector_store %arg3[%c0_11, %c0_12, %c0_13], %38 {strides = array<i32>} : memref<1x8x128xf32, #tpu.memory_space<vmem>>, vector<1x8x128xf32>,
    return
  }
  func.func @transform_0(%arg0: i32) -> (i32, i32) {
    %c0_i32 = arith.constant 0 : i32
    %c0_i32_0 = arith.constant 0 : i32
    return %arg0, %c0_i32 : i32, i32
  }
  func.func @transform_1(%arg0: i32) -> (i32, i32) {
    %c0_i32 = arith.constant 0 : i32
    %c0_i32_0 = arith.constant 0 : i32
    return %arg0, %c0_i32 : i32, i32
  }
  func.func @transform_2(%arg0: i32) -> (i32, i32, i32) {
    %c0_i32 = arith.constant 0 : i32
    %c0_i32_0 = arith.constant 0 : i32
    %c0_i32_1 = arith.constant 0 : i32
    return %arg0, %c0_i32, %c0_i32_0 : i32, i32, i32
  }
}

</mosaic_0001>

<llo_original>
// kernel: tpu_custom_call.1
$region0: #{tpu_custom_call.1}
  #allocation0 [shape = 'u32[]', space=smem, size = 0x4, offset = 0x4, fixed_abs, tag = 'smem constant byte address 0x4 - core index']
  #allocation1 [shape = 'u32[144,128]{1,0:T(1,128)}', space=vmem, size = 0x12000, scoped, tag = 'internal scratch']
  %s0 = inlined_call_operand.vmem [shape: f32[512,128], index: 0, kind: input, shape index: {}]
  %s1 = inlined_call_operand.vmem [shape: s32[512,1], index: 1, kind: input, shape index: {}]
  %s2 = inlined_call_operand.hbm [shape: f32[4,8,128], index: 2, kind: output, shape index: {}]
  %s3 = sld [smem:[#allocation0]]
  $region41: #{tpu_custom_call.1} parent=0
    _
  %s5 = ssub.s32 1, %s3
  %s6 = scalar_select 0, %s5, %s3
  $region1: #{tpu_custom_call.1} parent=0
    #allocation2 [shape = 'u8[8192]{0}', space=vmem, size = 0x2000, scoped, tag = 'output window, operand 0']
    #allocation3 [shape = 's32[2]{0}', space=sflag, size = 0x8, scoped, tag = 'scoped memory for tpu_custom_call.1']
    %7 = vsyncpa [#allocation3], 0
    %s8 = scalar_lea.sflag [#allocation3], 1
    %9 = vsyncpa %s8, 0
    loop: start=0, step=1, limit=6
    $region2: #{tpu_custom_call.1} parent=1 // loop_pre_header
      _
    $region3: #{tpu_custom_call.1} parent=1 // loop_header
      %s11 = sphi 0, %s15
      %p12 = scmp.ge.s32.totalorder %s11, 6
      %s21 = sphi 0, %s23
      %s24 = sphi 0, %s21
      %s25 = sphi 0, %s24
      %s41 = sphi 0, %s25
      %s47 = sphi 0, %s49
      %s50 = sphi 0, %s47
      %s51 = sphi 0, %s50
      %s67 = sphi 0, %s51
      %s73 = sphi 0, %s75
      %s76 = sphi 0, %s73
      %s77 = sphi 0, %s76
      %s93 = sphi 0, %s77
    $region4: #{tpu_custom_call.1} parent=1 // loop_header_branch
      %14 = sbr.rel (%p12) target = $region8
    $region5: #{tpu_custom_call.1} parent=1 // loop_body
      %s16 = ssub.s32 %s11, 1
      %s17 = ssub.s32 %s11, 2
      %s18 = sadd.s32 %s11, 1
      %s19 = ssub.s32 %s11, %s18
      %p20 = scmp.eq.s32.totalorder %s19, 0
      %s22 = sadd.s32 %s21, 1
      %s23 = scalar_select %p20, %s21, %s22
      %p26 = pneg %p20
      %p27 = scmp.eq.s32.totalorder %s11, 3
      %p28 = por %p26, %p27
      %p29 = scmp.ne.s32.totalorder %s21, %s24
      %p30 = scmp.eq.s32.totalorder %s11, 0
      %p31 = por %p29, %p30
      %p32 = scmp.ne.s32.totalorder %s21, %s24
      %p33 = scmp.eq.s32.totalorder %s16, 3
      %p34 = por %p32, %p33
      %p35 = scmp.ne.s32.totalorder %s24, %s25
      %p36 = scmp.eq.s32.totalorder %s16, 0
      %p37 = por %p35, %p36
      %p38 = scmp.ne.s32.totalorder %s24, %s25
      %p39 = scmp.eq.s32.totalorder %s17, 3
      %p40 = por %p38, %p39
      %p42 = scmp.ne.s32.totalorder %s25, %s41
      %p43 = scmp.eq.s32.totalorder %s17, 0
      %p44 = por %p42, %p43
      %s45 = ssub.s32 %s11, %s18
      %p46 = scmp.eq.s32.totalorder %s45, 0
      %s48 = sadd.s32 %s47, 1
      %s49 = scalar_select %p46, %s47, %s48
      %p52 = pneg %p46
      %p53 = scmp.eq.s32.totalorder %s11, 3
      %p54 = por %p52, %p53
      %p55 = scmp.ne.s32.totalorder %s47, %s50
      %p56 = scmp.eq.s32.totalorder %s11, 0
      %p57 = por %p55, %p56
      %p58 = scmp.ne.s32.totalorder %s47, %s50
      %p59 = scmp.eq.s32.totalorder %s16, 3
      %p60 = por %p58, %p59
      %p61 = scmp.ne.s32.totalorder %s50, %s51
      %p62 = scmp.eq.s32.totalorder %s16, 0
      %p63 = por %p61, %p62
      %p64 = scmp.ne.s32.totalorder %s50, %s51
      %p65 = scmp.eq.s32.totalorder %s17, 3
      %p66 = por %p64, %p65
      %p68 = scmp.ne.s32.totalorder %s51, %s67
      %p69 = scmp.eq.s32.totalorder %s17, 0
      %p70 = por %p68, %p69
      %s71 = ssub.s32 %s11, %s18
      %p72 = scmp.eq.s32.totalorder %s71, 0
      %s74 = sadd.s32 %s73, 1
      %s75 = scalar_select %p72, %s73, %s74
      %p78 = pneg %p72
      %p79 = scmp.eq.s32.totalorder %s11, 3
      %p80 = por %p78, %p79
      %p81 = scmp.ne.s32.totalorder %s73, %s76
      %p82 = scmp.eq.s32.totalorder %s11, 0
      %p83 = por %p81, %p82
      %p84 = scmp.ne.s32.totalorder %s73, %s76
      %p85 = scmp.eq.s32.totalorder %s16, 3
      %p86 = por %p84, %p85
      %p87 = scmp.ne.s32.totalorder %s76, %s77
      %p88 = scmp.eq.s32.totalorder %s16, 0
      %p89 = por %p87, %p88
      %p90 = scmp.ne.s32.totalorder %s76, %s77
      %p91 = scmp.eq.s32.totalorder %s17, 3
      %p92 = por %p90, %p91
      %p94 = scmp.ne.s32.totalorder %s77, %s93
      %p95 = scmp.eq.s32.totalorder %s17, 0
      %p96 = por %p94, %p95
      %p97 = scmp.le.s32.totalorder 1, %s11
      %p98 = scmp.lt.s32.totalorder %s11, 5
      %p99 = pnand %p97, %p98
      %p100 = pneg %p99
      // Predicated region
      $region9: #{tpu_custom_call.1} parent=5 // pred_check
        _
      $region10: #{tpu_custom_call.1} parent=5 // pred_check_branch
        %102 = sbr.rel (%p99) target = $region12
      $region11: #{tpu_custom_call.1} parent=5 // pred_region
        %s103 = ssub.s32 %s11, 1
      $region12: #{tpu_custom_call.1} parent=5 // pred_fallthru
        _
      %p104 = scmp.lt.s32.totalorder %s11, 4
      // Predicated region
      $region13: #{tpu_custom_call.1} parent=5 // pred_check
        %p105 = pneg %p104
      $region14: #{tpu_custom_call.1} parent=5 // pred_check_branch
        %107 = sbr.rel (%p105) target = $region16
      $region15: #{tpu_custom_call.1} parent=5 // pred_region
        // Predicated region
        $region17: #{tpu_custom_call.1} parent=15 // pred_check
          %p108 = pneg %p31
        $region18: #{tpu_custom_call.1} parent=15 // pred_check_branch
          %110 = sbr.rel (%p108) target = $region20
        $region19: #{tpu_custom_call.1} parent=15 // pred_region
          %s111 = smul.u32 16, %s11
          %p112 = scmp.lt.s32.totalorder %s111, 63
          %s113 = scalar_select %p112, %s111, 63
          %s114 = smul.addr %s113, 8
          %s115 = scalar_lea.vmem %s0, %s114
          %s116 = smul.u32 16, %s11
        $region20: #{tpu_custom_call.1} parent=15 // pred_fallthru
          _
        // Predicated region
        $region21: #{tpu_custom_call.1} parent=15 // pred_check
          %p117 = pneg %p57
        $region22: #{tpu_custom_call.1} parent=15 // pred_check_branch
          %119 = sbr.rel (%p117) target = $region24
        $region23: #{tpu_custom_call.1} parent=15 // pred_region
          %s120 = smul.u32 16, %s11
          %p121 = scmp.lt.s32.totalorder %s120, 63
          %s122 = scalar_select %p121, %s120, 63
          %s123 = smul.addr %s122, 8
          %s124 = scalar_lea.vmem %s1, %s123
          %s125 = smul.u32 16, %s11
        $region24: #{tpu_custom_call.1} parent=15 // pred_fallthru
          _
      $region16: #{tpu_custom_call.1} parent=5 // pred_fallthru
        _
      %p126 = scmp.le.s32.totalorder 1, %s11
      %p127 = scmp.lt.s32.totalorder %s11, 5
      %p128 = pnand %p126, %p127
      %p129 = pneg %p128
      // Predicated region
      $region25: #{tpu_custom_call.1} parent=5 // pred_check
        _
      $region26: #{tpu_custom_call.1} parent=5 // pred_check_branch
        %131 = sbr.rel (%p128) target = $region28
      $region27: #{tpu_custom_call.1} parent=5 // pred_region
        %s132 = ssub.s32 %s11, 1
        %s133 = smul.u32 16, %s16
        %p134 = scmp.lt.s32.totalorder %s133, 63
        %s135 = scalar_select %p134, %s133, 63
        %s136 = smul.addr %s135, 8
        %s137 = scalar_lea.vmem %s0, %s136
        %p138 = pneg %p37
        %p139 = pneg %p34
        %s140 = smul.u32 16, %s16
        %p141 = scmp.lt.s32.totalorder %s140, 63
        %s142 = scalar_select %p141, %s140, 63
        %s143 = smul.addr %s142, 8
        %s144 = scalar_lea.vmem %s1, %s143
        %p145 = pneg %p63
        %p146 = pneg %p60
        %p147 = pneg %p89
        %p148 = pneg %p86
        %s149 = sand.u32 %s76, 1
        %s150 = scalar_lea.sflag [#allocation3], %s149
        %s151 = sand.u32 %s76, 1
        %s152 = smul.addr %s151, 8
        %s153 = scalar_lea.vmem [#allocation2], %s152
        %s154 = smul.u32 16, %s16
        %p155 = scmp.lt.s32.totalorder %s154, 63
        %s156 = scalar_select %p155, %s154, 63
        %s157 = smul.addr %s156, 8
        %s158 = scalar_lea.vmem %s0, %s157
        %s159 = smul.u32 16, %s16
        %s160 = smul.u32 16, %s16
        %p161 = scmp.lt.s32.totalorder %s160, 63
        %s162 = scalar_select %p161, %s160, 63
        %s163 = smul.addr %s162, 8
        %s164 = scalar_lea.vmem %s1, %s163
        %s165 = smul.u32 16, %s16
        %v166 = vld [vmem:[%s158] sm:$0xff]
        %v167 = vld [vmem:[%s158 + $0x8] sm:$0xff]
        %v168 = vld [vmem:[%s158 + $0x10] sm:$0xff]
        %v169 = vld [vmem:[%s158 + $0x18] sm:$0xff]
        %v170 = vld [vmem:[%s158 + $0x20] sm:$0xff]
        %v171 = vld [vmem:[%s158 + $0x28] sm:$0xff]
        %v172 = vld [vmem:[%s158 + $0x30] sm:$0xff]
        %v173 = vld [vmem:[%s158 + $0x38] sm:$0xff]
        %v174 = vld [vmem:[%s158 + $0x40] sm:$0xff]
        %v175 = vld [vmem:[%s158 + $0x48] sm:$0xff]
        %v176 = vld [vmem:[%s158 + $0x50] sm:$0xff]
        %v177 = vld [vmem:[%s158 + $0x58] sm:$0xff]
        %v178 = vld [vmem:[%s158 + $0x60] sm:$0xff]
        %v179 = vld [vmem:[%s158 + $0x68] sm:$0xff]
        %v180 = vld [vmem:[%s158 + $0x70] sm:$0xff]
        %v181 = vld [vmem:[%s158 + $0x78] sm:$0xff]
        %v182 = vld [vmem:[%s164] sm:$0xff]
        %v183 = vld [vmem:[%s164 + $0x8] sm:$0xff]
        %v184 = vld [vmem:[%s164 + $0x10] sm:$0xff]
        %v185 = vld [vmem:[%s164 + $0x18] sm:$0xff]
        %v186 = vld [vmem:[%s164 + $0x20] sm:$0xff]
        %v187 = vld [vmem:[%s164 + $0x28] sm:$0xff]
        %v188 = vld [vmem:[%s164 + $0x30] sm:$0xff]
        %v189 = vld [vmem:[%s164 + $0x38] sm:$0xff]
        %v190 = vld [vmem:[%s164 + $0x40] sm:$0xff]
        %v191 = vld [vmem:[%s164 + $0x48] sm:$0xff]
        %v192 = vld [vmem:[%s164 + $0x50] sm:$0xff]
        %v193 = vld [vmem:[%s164 + $0x58] sm:$0xff]
        %v194 = vld [vmem:[%s164 + $0x60] sm:$0xff]
        %v195 = vld [vmem:[%s164 + $0x68] sm:$0xff]
        %v196 = vld [vmem:[%s164 + $0x70] sm:$0xff]
        %v197 = vld [vmem:[%s164 + $0x78] sm:$0xff]
        %198 = vmax.xlane.f32.xlu0 %v166
        %v199 = vpop.xlane.xlu0 %198
        %200 = vmax.xlane.f32.xlu0 %v167
        %v201 = vpop.xlane.xlu0 %200
        %202 = vmax.xlane.f32.xlu0 %v168
        %v203 = vpop.xlane.xlu0 %202
        %204 = vmax.xlane.f32.xlu0 %v169
        %v205 = vpop.xlane.xlu0 %204
        %206 = vmax.xlane.f32.xlu0 %v170
        %v207 = vpop.xlane.xlu0 %206
        %208 = vmax.xlane.f32.xlu0 %v171
        %v209 = vpop.xlane.xlu0 %208
        %210 = vmax.xlane.f32.xlu0 %v172
        %v211 = vpop.xlane.xlu0 %210
        %212 = vmax.xlane.f32.xlu0 %v173
        %v213 = vpop.xlane.xlu0 %212
        %214 = vmax.xlane.f32.xlu0 %v174
        %v215 = vpop.xlane.xlu0 %214
        %216 = vmax.xlane.f32.xlu0 %v175
        %v217 = vpop.xlane.xlu0 %216
        %218 = vmax.xlane.f32.xlu0 %v176
        %v219 = vpop.xlane.xlu0 %218
        %220 = vmax.xlane.f32.xlu0 %v177
        %v221 = vpop.xlane.xlu0 %220
        %222 = vmax.xlane.f32.xlu0 %v178
        %v223 = vpop.xlane.xlu0 %222
        %224 = vmax.xlane.f32.xlu0 %v179
        %v225 = vpop.xlane.xlu0 %224
        %226 = vmax.xlane.f32.xlu0 %v180
        %v227 = vpop.xlane.xlu0 %226
        %228 = vmax.xlane.f32.xlu0 %v181
        %v229 = vpop.xlane.xlu0 %228
        %v230 = vsub.f32 %v166, %v199
        %v231 = vsub.f32 %v167, %v201
        %v232 = vsub.f32 %v168, %v203
        %v233 = vsub.f32 %v169, %v205
        %v234 = vsub.f32 %v170, %v207
        %v235 = vsub.f32 %v171, %v209
        %v236 = vsub.f32 %v172, %v211
        %v237 = vsub.f32 %v173, %v213
        %v238 = vsub.f32 %v174, %v215
        %v239 = vsub.f32 %v175, %v217
        %v240 = vsub.f32 %v176, %v219
        %v241 = vsub.f32 %v177, %v221
        %v242 = vsub.f32 %v178, %v223
        %v243 = vsub.f32 %v179, %v225
        %v244 = vsub.f32 %v180, %v227
        %v245 = vsub.f32 %v181, %v229
        %v246 = vmul.f32 %v230, 1.442695
        %v247 = vpow.pop %v246
        %v248 = vmul.f32 %v231, 1.442695
        %v249 = vpow.pop %v248
        %v250 = vmul.f32 %v232, 1.442695
        %v251 = vpow.pop %v250
        %v252 = vmul.f32 %v233, 1.442695
        %v253 = vpow.pop %v252
        %v254 = vmul.f32 %v234, 1.442695
        %v255 = vpow.pop %v254
        %v256 = vmul.f32 %v235, 1.442695
        %v257 = vpow.pop %v256
        %v258 = vmul.f32 %v236, 1.442695
        %v259 = vpow.pop %v258
        %v260 = vmul.f32 %v237, 1.442695
        %v261 = vpow.pop %v260
        %v262 = vmul.f32 %v238, 1.442695
        %v263 = vpow.pop %v262
        %v264 = vmul.f32 %v239, 1.442695
        %v265 = vpow.pop %v264
        %v266 = vmul.f32 %v240, 1.442695
        %v267 = vpow.pop %v266
        %v268 = vmul.f32 %v241, 1.442695
        %v269 = vpow.pop %v268
        %v270 = vmul.f32 %v242, 1.442695
        %v271 = vpow.pop %v270
        %v272 = vmul.f32 %v243, 1.442695
        %v273 = vpow.pop %v272
        %v274 = vmul.f32 %v244, 1.442695
        %v275 = vpow.pop %v274
        %v276 = vmul.f32 %v245, 1.442695
        %v277 = vpow.pop %v276
        %v278 = vlaneseq
        %v279 = vand.u32 %v278, 127
        %280 = vset.pattern.permute.xlu0 0
        %281 = vperm.xlu0 %280, %v182
        %v282 = vpop.permute.xlu0 %281
        %283 = vset.pattern.permute.xlu0 0
        %284 = vperm.xlu0 %283, %v183
        %v285 = vpop.permute.xlu0 %284
        %286 = vset.pattern.permute.xlu0 0
        %287 = vperm.xlu0 %286, %v184
        %v288 = vpop.permute.xlu0 %287
        %289 = vset.pattern.permute.xlu0 0
        %290 = vperm.xlu0 %289, %v185
        %v291 = vpop.permute.xlu0 %290
        %292 = vset.pattern.permute.xlu0 0
        %293 = vperm.xlu0 %292, %v186
        %v294 = vpop.permute.xlu0 %293
        %295 = vset.pattern.permute.xlu0 0
        %296 = vperm.xlu0 %295, %v187
        %v297 = vpop.permute.xlu0 %296
        %298 = vset.pattern.permute.xlu0 0
        %299 = vperm.xlu0 %298, %v188
        %v300 = vpop.permute.xlu0 %299
        %301 = vset.pattern.permute.xlu0 0
        %302 = vperm.xlu0 %301, %v189
        %v303 = vpop.permute.xlu0 %302
        %304 = vset.pattern.permute.xlu0 0
        %305 = vperm.xlu0 %304, %v190
        %v306 = vpop.permute.xlu0 %305
        %307 = vset.pattern.permute.xlu0 0
        %308 = vperm.xlu0 %307, %v191
        %v309 = vpop.permute.xlu0 %308
        %310 = vset.pattern.permute.xlu0 0
        %311 = vperm.xlu0 %310, %v192
        %v312 = vpop.permute.xlu0 %311
        %313 = vset.pattern.permute.xlu0 0
        %314 = vperm.xlu0 %313, %v193
        %v315 = vpop.permute.xlu0 %314
        %316 = vset.pattern.permute.xlu0 0
        %317 = vperm.xlu0 %316, %v194
        %v318 = vpop.permute.xlu0 %317
        %319 = vset.pattern.permute.xlu0 0
        %320 = vperm.xlu0 %319, %v195
        %v321 = vpop.permute.xlu0 %320
        %322 = vset.pattern.permute.xlu0 0
        %323 = vperm.xlu0 %322, %v196
        %v324 = vpop.permute.xlu0 %323
        %325 = vset.pattern.permute.xlu0 0
        %326 = vperm.xlu0 %325, %v197
        %v327 = vpop.permute.xlu0 %326
        %vm328 = vcmp.eq.s32.totalorder %v279, %v282
        %vm329 = vcmp.eq.s32.totalorder %v279, %v285
        %vm330 = vcmp.eq.s32.totalorder %v279, %v288
        %vm331 = vcmp.eq.s32.totalorder %v279, %v291
        %vm332 = vcmp.eq.s32.totalorder %v279, %v294
        %vm333 = vcmp.eq.s32.totalorder %v279, %v297
        %vm334 = vcmp.eq.s32.totalorder %v279, %v300
        %vm335 = vcmp.eq.s32.totalorder %v279, %v303
        %vm336 = vcmp.eq.s32.totalorder %v279, %v306
        %vm337 = vcmp.eq.s32.totalorder %v279, %v309
        %vm338 = vcmp.eq.s32.totalorder %v279, %v312
        %vm339 = vcmp.eq.s32.totalorder %v279, %v315
        %vm340 = vcmp.eq.s32.totalorder %v279, %v318
        %vm341 = vcmp.eq.s32.totalorder %v279, %v321
        %vm342 = vcmp.eq.s32.totalorder %v279, %v324
        %vm343 = vcmp.eq.s32.totalorder %v279, %v327
        %v344 = vsel %vm328, %v230, 0.0
        %v345 = vsel %vm329, %v231, 0.0
        %v346 = vsel %vm330, %v232, 0.0
        %v347 = vsel %vm331, %v233, 0.0
        %v348 = vsel %vm332, %v234, 0.0
        %v349 = vsel %vm333, %v235, 0.0
        %v350 = vsel %vm334, %v236, 0.0
        %v351 = vsel %vm335, %v237, 0.0
        %v352 = vsel %vm336, %v238, 0.0
        %v353 = vsel %vm337, %v239, 0.0
        %v354 = vsel %vm338, %v240, 0.0
        %v355 = vsel %vm339, %v241, 0.0
        %v356 = vsel %vm340, %v242, 0.0
        %v357 = vsel %vm341, %v243, 0.0
        %v358 = vsel %vm342, %v244, 0.0
        %v359 = vsel %vm343, %v245, 0.0
        %360 = vmatprep.subr.mxu0 0.0
        %361 = vmatpush1.msra.mxu0 1.0
        %362 = vmatprep.subr.mxu0 0.0
        %363 = vmatpush1.msra.mxu0 1.0
        %364 = vmatprep.subr.mxu0 0.0
        %365 = vmatpush1.msra.mxu0 1.0
        %366 = vmatprep.subr.mxu0 0.0
        %367 = vmatpush1.msra.mxu0 1.0
        %368 = vmatprep.subr.mxu0 0.0
        %369 = vmatpush1.msra.mxu0 1.0
        %370 = vmatprep.subr.mxu0 0.0
        %371 = vmatpush1.msra.mxu0 1.0
        %372 = vmatprep.subr.mxu0 0.0
        %373 = vmatpush1.msra.mxu0 1.0
        %374 = vmatprep.subr.mxu0 0.0
        %375 = vmatpush1.msra.mxu0 1.0
        %376 = vmatprep.subr.mxu0 0.0
        %377 = vmatpush1.msra.mxu0 1.0
        %378 = vmatprep.subr.mxu0 0.0
        %379 = vmatpush1.msra.mxu0 1.0
        %380 = vmatprep.subr.mxu0 0.0
        %381 = vmatpush1.msra.mxu0 1.0
        %382 = vmatprep.subr.mxu0 0.0
        %383 = vmatpush1.msra.mxu0 1.0
        %384 = vmatprep.subr.mxu0 0.0
        %385 = vmatpush1.msra.mxu0 1.0
        %386 = vmatprep.subr.mxu0 0.0
        %387 = vmatpush1.msra.mxu0 1.0
        %388 = vmatprep.subr.mxu0 0.0
        %389 = vmatpush1.msra.mxu0 1.0
        %390 = vmatprep.subr.mxu0 0.0
        %391 = vmatpush1.msra.mxu0 1.0
        %392 = vmatprep.subr.mxu0 0.0
        %393 = vmatpush1.msra.mxu0 0.0
        %394 = vmatprep.subr.mxu0 0.0
        %395 = vmatpush1.msra.mxu0 0.0
        %396 = vmatprep.subr.mxu0 0.0
        %397 = vmatpush1.msra.mxu0 0.0
        %398 = vmatprep.subr.mxu0 0.0
        %399 = vmatpush1.msra.mxu0 0.0
        %400 = vmatprep.subr.mxu0 0.0
        %401 = vmatpush1.msra.mxu0 0.0
        %402 = vmatprep.subr.mxu0 0.0
        %403 = vmatpush1.msra.mxu0 0.0
        %404 = vmatprep.subr.mxu0 0.0
        %405 = vmatpush1.msra.mxu0 0.0
        %406 = vmatprep.subr.mxu0 0.0
        %407 = vmatpush1.msra.mxu0 0.0
        %408 = vmatprep.subr.mxu0 0.0
        %409 = vmatpush1.msra.mxu0 0.0
        %410 = vmatprep.subr.mxu0 0.0
        %411 = vmatpush1.msra.mxu0 0.0
        %412 = vmatprep.subr.mxu0 0.0
        %413 = vmatpush1.msra.mxu0 0.0
        %414 = vmatprep.subr.mxu0 0.0
        %415 = vmatpush1.msra.mxu0 0.0
        %416 = vmatprep.subr.mxu0 0.0
        %417 = vmatpush1.msra.mxu0 0.0
        %418 = vmatprep.subr.mxu0 0.0
        %419 = vmatpush1.msra.mxu0 0.0
        %420 = vmatprep.subr.mxu0 0.0
        %421 = vmatpush1.msra.mxu0 0.0
        %422 = vmatprep.subr.mxu0 0.0
        %423 = vmatpush1.msra.mxu0 0.0
        %424 = vmatprep.mubr.f32.mxu0 0.0
        %v425 = vand.u32 %v247, 4294901760
        %v426 = vsub.f32 %v247, %v425
        %v427 = vand.u32 %v426, 4294901760
        %v428 = vsub.f32 %v426, %v427
        %v429 = vand.u32 %v428, 4294901760
        %430 = vmatmul.mubr.f32.gmra.mrb[0].mxu0 %v429
        %v431 = vpop.f32.mrb[0].mxu0
        %v432 = vadd.f32 0.0, %v431
        %v433 = vpop.f32.mrb[0].mxu0
        %434 = vmatprep.mubr.f32.mxu0 0.0
        %v435 = vand.u32 %v249, 4294901760
        %v436 = vsub.f32 %v249, %v435
        %v437 = vand.u32 %v436, 4294901760
        %v438 = vsub.f32 %v436, %v437
        %v439 = vand.u32 %v438, 4294901760
        %440 = vmatmul.mubr.f32.gmra.mrb[0].mxu0 %v439
        %v441 = vpop.f32.mrb[0].mxu0
        %v442 = vadd.f32 0.0, %v441
        %v443 = vpop.f32.mrb[0].mxu0
        %444 = vmatprep.mubr.f32.mxu0 0.0
        %v445 = vand.u32 %v251, 4294901760
        %v446 = vsub.f32 %v251, %v445
        %v447 = vand.u32 %v446, 4294901760
        %v448 = vsub.f32 %v446, %v447
        %v449 = vand.u32 %v448, 4294901760
        %450 = vmatmul.mubr.f32.gmra.mrb[0].mxu0 %v449
        %v451 = vpop.f32.mrb[0].mxu0
        %v452 = vadd.f32 0.0, %v451
        %v453 = vpop.f32.mrb[0].mxu0
        %454 = vmatprep.mubr.f32.mxu0 0.0
        %v455 = vand.u32 %v253, 4294901760
        %v456 = vsub.f32 %v253, %v455
        %v457 = vand.u32 %v456, 4294901760
        %v458 = vsub.f32 %v456, %v457
        %v459 = vand.u32 %v458, 4294901760
        %460 = vmatmul.mubr.f32.gmra.mrb[0].mxu0 %v459
        %v461 = vpop.f32.mrb[0].mxu0
        %v462 = vadd.f32 0.0, %v461
        %v463 = vpop.f32.mrb[0].mxu0
        %464 = vmatprep.mubr.f32.mxu0 0.0
        %v465 = vand.u32 %v255, 4294901760
        %v466 = vsub.f32 %v255, %v465
        %v467 = vand.u32 %v466, 4294901760
        %v468 = vsub.f32 %v466, %v467
        %v469 = vand.u32 %v468, 4294901760
        %470 = vmatmul.mubr.f32.gmra.mrb[0].mxu0 %v469
        %v471 = vpop.f32.mrb[0].mxu0
        %v472 = vadd.f32 0.0, %v471
        %v473 = vpop.f32.mrb[0].mxu0
        %474 = vmatprep.mubr.f32.mxu0 0.0
        %v475 = vand.u32 %v257, 4294901760
        %v476 = vsub.f32 %v257, %v475
        %v477 = vand.u32 %v476, 4294901760
        %v478 = vsub.f32 %v476, %v477
        %v479 = vand.u32 %v478, 4294901760
        %480 = vmatmul.mubr.f32.gmra.mrb[0].mxu0 %v479
        %v481 = vpop.f32.mrb[0].mxu0
        %v482 = vadd.f32 0.0, %v481
        %v483 = vpop.f32.mrb[0].mxu0
        %484 = vmatprep.mubr.f32.mxu0 0.0
        %v485 = vand.u32 %v259, 4294901760
        %v486 = vsub.f32 %v259, %v485
        %v487 = vand.u32 %v486, 4294901760
        %v488 = vsub.f32 %v486, %v487
        %v489 = vand.u32 %v488, 4294901760
        %490 = vmatmul.mubr.f32.gmra.mrb[0].mxu0 %v489
        %v491 = vpop.f32.mrb[0].mxu0
        %v492 = vadd.f32 0.0, %v491
        %v493 = vpop.f32.mrb[0].mxu0
        %494 = vmatprep.mubr.f32.mxu0 0.0
        %v495 = vand.u32 %v261, 4294901760
        %v496 = vsub.f32 %v261, %v495
        %v497 = vand.u32 %v496, 4294901760
        %v498 = vsub.f32 %v496, %v497
        %v499 = vand.u32 %v498, 4294901760
        %500 = vmatmul.mubr.f32.gmra.mrb[0].mxu0 %v499
        %v501 = vpop.f32.mrb[0].mxu0
        %v502 = vadd.f32 0.0, %v501
        %v503 = vpop.f32.mrb[0].mxu0
        %504 = vmatprep.mubr.f32.mxu0 0.0
        %v505 = vand.u32 %v263, 4294901760
        %v506 = vsub.f32 %v263, %v505
        %v507 = vand.u32 %v506, 4294901760
        %v508 = vsub.f32 %v506, %v507
        %v509 = vand.u32 %v508, 4294901760
        %510 = vmatmul.mubr.f32.gmra.mrb[0].mxu0 %v509
        %v511 = vpop.f32.mrb[0].mxu0
        %v512 = vadd.f32 0.0, %v511
        %v513 = vpop.f32.mrb[0].mxu0
        %514 = vmatprep.mubr.f32.mxu0 0.0
        %v515 = vand.u32 %v265, 4294901760
        %v516 = vsub.f32 %v265, %v515
        %v517 = vand.u32 %v516, 4294901760
        %v518 = vsub.f32 %v516, %v517
        %v519 = vand.u32 %v518, 4294901760
        %520 = vmatmul.mubr.f32.gmra.mrb[0].mxu0 %v519
        %v521 = vpop.f32.mrb[0].mxu0
        %v522 = vadd.f32 0.0, %v521
        %v523 = vpop.f32.mrb[0].mxu0
        %524 = vmatprep.mubr.f32.mxu0 0.0
        %v525 = vand.u32 %v267, 4294901760
        %v526 = vsub.f32 %v267, %v525
        %v527 = vand.u32 %v526, 4294901760
        %v528 = vsub.f32 %v526, %v527
        %v529 = vand.u32 %v528, 4294901760
        %530 = vmatmul.mubr.f32.gmra.mrb[0].mxu0 %v529
        %v531 = vpop.f32.mrb[0].mxu0
        %v532 = vadd.f32 0.0, %v531
        %v533 = vpop.f32.mrb[0].mxu0
        %534 = vmatprep.mubr.f32.mxu0 0.0
        %v535 = vand.u32 %v269, 4294901760
        %v536 = vsub.f32 %v269, %v535
        %v537 = vand.u32 %v536, 4294901760
        %v538 = vsub.f32 %v536, %v537
        %v539 = vand.u32 %v538, 4294901760
        %540 = vmatmul.mubr.f32.gmra.mrb[0].mxu0 %v539
        %v541 = vpop.f32.mrb[0].mxu0
        %v542 = vadd.f32 0.0, %v541
        %v543 = vpop.f32.mrb[0].mxu0
        %544 = vmatprep.mubr.f32.mxu0 0.0
        %v545 = vand.u32 %v271, 4294901760
        %v546 = vsub.f32 %v271, %v545
        %v547 = vand.u32 %v546, 4294901760
        %v548 = vsub.f32 %v546, %v547
        %v549 = vand.u32 %v548, 4294901760
        %550 = vmatmul.mubr.f32.gmra.mrb[0].mxu0 %v549
        %v551 = vpop.f32.mrb[0].mxu0
        %v552 = vadd.f32 0.0, %v551
        %v553 = vpop.f32.mrb[0].mxu0
        %554 = vmatprep.mubr.f32.mxu0 0.0
        %v555 = vand.u32 %v273, 4294901760
        %v556 = vsub.f32 %v273, %v555
        %v557 = vand.u32 %v556, 4294901760
        %v558 = vsub.f32 %v556, %v557
        %v559 = vand.u32 %v558, 4294901760
        %560 = vmatmul.mubr.f32.gmra.mrb[0].mxu0 %v559
        %v561 = vpop.f32.mrb[0].mxu0
        %v562 = vadd.f32 0.0, %v561
        %v563 = vpop.f32.mrb[0].mxu0
        %564 = vmatprep.mubr.f32.mxu0 0.0
        %v565 = vand.u32 %v275, 4294901760
        %v566 = vsub.f32 %v275, %v565
        %v567 = vand.u32 %v566, 4294901760
        %v568 = vsub.f32 %v566, %v567
        %v569 = vand.u32 %v568, 4294901760
        %570 = vmatmul.mubr.f32.gmra.mrb[0].mxu0 %v569
        %v571 = vpop.f32.mrb[0].mxu0
        %v572 = vadd.f32 0.0, %v571
        %v573 = vpop.f32.mrb[0].mxu0
        %574 = vmatprep.mubr.f32.mxu0 0.0
        %v575 = vand.u32 %v277, 4294901760
        %v576 = vsub.f32 %v277, %v575
        %v577 = vand.u32 %v576, 4294901760
        %v578 = vsub.f32 %v576, %v577
        %v579 = vand.u32 %v578, 4294901760
        %580 = vmatmul.mubr.f32.gmra.mrb[0].mxu0 %v579
        %v581 = vpop.f32.mrb[0].mxu0
        %v582 = vadd.f32 0.0, %v581
        %v583 = vpop.f32.mrb[0].mxu0
        %584 = vdwg.mxu0
        %585 = vmatprep.subr.mxu0 0.0
        %586 = vmatpush1.msra.mxu0 0.0
        %587 = vmatprep.subr.mxu0 0.0
        %588 = vmatpush1.msra.mxu0 0.0
        %589 = vmatprep.subr.mxu0 0.0
        %590 = vmatpush1.msra.mxu0 0.0
        %591 = vmatprep.subr.mxu0 0.0
        %592 = vmatpush1.msra.mxu0 0.0
        %593 = vmatprep.subr.mxu0 0.0
        %594 = vmatpush1.msra.mxu0 0.0
        %595 = vmatprep.subr.mxu0 0.0
        %596 = vmatpush1.msra.mxu0 0.0
        %597 = vmatprep.subr.mxu0 0.0
        %598 = vmatpush1.msra.mxu0 0.0
        %599 = vmatprep.subr.mxu0 0.0
        %600 = vmatpush1.msra.mxu0 0.0
        %601 = vmatprep.subr.mxu0 0.0
        %602 = vmatpush1.msra.mxu0 0.0
        %603 = vmatprep.subr.mxu0 0.0
        %604 = vmatpush1.msra.mxu0 0.0
        %605 = vmatprep.subr.mxu0 0.0
        %606 = vmatpush1.msra.mxu0 0.0
        %607 = vmatprep.subr.mxu0 0.0
        %608 = vmatpush1.msra.mxu0 0.0
        %609 = vmatprep.subr.mxu0 0.0
        %610 = vmatpush1.msra.mxu0 0.0
        %611 = vmatprep.subr.mxu0 0.0
        %612 = vmatpush1.msra.mxu0 0.0
        %613 = vmatprep.subr.mxu0 0.0
        %614 = vmatpush1.msra.mxu0 0.0
        %615 = vmatprep.subr.mxu0 0.0
        %616 = vmatpush1.msra.mxu0 0.0
        %617 = vmatprep.subr.mxu0 0.0
        %618 = vmatpush1.msra.mxu0 0.0
        %619 = vmatprep.subr.mxu0 0.0
        %620 = vmatpush1.msra.mxu0 0.0
        %621 = vmatprep.subr.mxu0 0.0
        %622 = vmatpush1.msra.mxu0 0.0
        %623 = vmatprep.subr.mxu0 0.0
        %624 = vmatpush1.msra.mxu0 0.0
        %625 = vmatprep.subr.mxu0 0.0
        %626 = vmatpush1.msra.mxu0 0.0
        %627 = vmatprep.subr.mxu0 0.0
        %628 = vmatpush1.msra.mxu0 0.0
        %629 = vmatprep.subr.mxu0 0.0
        %630 = vmatpush1.msra.mxu0 0.0
        %631 = vmatprep.subr.mxu0 0.0
        %632 = vmatpush1.msra.mxu0 0.0
        %633 = vmatprep.subr.mxu0 0.0
        %634 = vmatpush1.msra.mxu0 0.0
        %635 = vmatprep.subr.mxu0 0.0
        %636 = vmatpush1.msra.mxu0 0.0
        %637 = vmatprep.subr.mxu0 0.0
        %638 = vmatpush1.msra.mxu0 0.0
        %639 = vmatprep.subr.mxu0 0.0
        %640 = vmatpush1.msra.mxu0 0.0
        %641 = vmatprep.subr.mxu0 0.0
        %642 = vmatpush1.msra.mxu0 0.0
        %643 = vmatprep.subr.mxu0 0.0
        %644 = vmatpush1.msra.mxu0 0.0
        %645 = vmatprep.subr.mxu0 0.0
        %646 = vmatpush1.msra.mxu0 0.0
        %647 = vmatprep.subr.mxu0 0.0
        %648 = vmatpush1.msra.mxu0 0.0
        %649 = vmatprep.mubr.f32.mxu0 0.0
        %v650 = vand.u32 %v247, 4294901760
        %651 = vmatmul.mubr.f32.gmra.mrb[0].mxu0 %v650
        %v652 = vpop.f32.mrb[0].mxu0
        %v653 = vadd.f32 %v432, %v652
        %v654 = vpop.f32.mrb[0].mxu0
        %655 = vmatprep.mubr.f32.mxu0 0.0
        %v656 = vand.u32 %v249, 4294901760
        %657 = vmatmul.mubr.f32.gmra.mrb[0].mxu0 %v656
        %v658 = vpop.f32.mrb[0].mxu0
        %v659 = vadd.f32 %v442, %v658
        %v660 = vpop.f32.mrb[0].mxu0
        %661 = vmatprep.mubr.f32.mxu0 0.0
        %v662 = vand.u32 %v251, 4294901760
        %663 = vmatmul.mubr.f32.gmra.mrb[0].mxu0 %v662
        %v664 = vpop.f32.mrb[0].mxu0
        %v665 = vadd.f32 %v452, %v664
        %v666 = vpop.f32.mrb[0].mxu0
        %667 = vmatprep.mubr.f32.mxu0 0.0
        %v668 = vand.u32 %v253, 4294901760
        %669 = vmatmul.mubr.f32.gmra.mrb[0].mxu0 %v668
        %v670 = vpop.f32.mrb[0].mxu0
        %v671 = vadd.f32 %v462, %v670
        %v672 = vpop.f32.mrb[0].mxu0
        %673 = vmatprep.mubr.f32.mxu0 0.0
        %v674 = vand.u32 %v255, 4294901760
        %675 = vmatmul.mubr.f32.gmra.mrb[0].mxu0 %v674
        %v676 = vpop.f32.mrb[0].mxu0
        %v677 = vadd.f32 %v472, %v676
        %v678 = vpop.f32.mrb[0].mxu0
        %679 = vmatprep.mubr.f32.mxu0 0.0
        %v680 = vand.u32 %v257, 4294901760
        %681 = vmatmul.mubr.f32.gmra.mrb[0].mxu0 %v680
        %v682 = vpop.f32.mrb[0].mxu0
        %v683 = vadd.f32 %v482, %v682
        %v684 = vpop.f32.mrb[0].mxu0
        %685 = vmatprep.mubr.f32.mxu0 0.0
        %v686 = vand.u32 %v259, 4294901760
        %687 = vmatmul.mubr.f32.gmra.mrb[0].mxu0 %v686
        %v688 = vpop.f32.mrb[0].mxu0
        %v689 = vadd.f32 %v492, %v688
        %v690 = vpop.f32.mrb[0].mxu0
        %691 = vmatprep.mubr.f32.mxu0 0.0
        %v692 = vand.u32 %v261, 4294901760
        %693 = vmatmul.mubr.f32.gmra.mrb[0].mxu0 %v692
        %v694 = vpop.f32.mrb[0].mxu0
        %v695 = vadd.f32 %v502, %v694
        %v696 = vpop.f32.mrb[0].mxu0
        %697 = vmatprep.mubr.f32.mxu0 0.0
        %v698 = vand.u32 %v263, 4294901760
        %699 = vmatmul.mubr.f32.gmra.mrb[0].mxu0 %v698
        %v700 = vpop.f32.mrb[0].mxu0
        %v701 = vadd.f32 %v512, %v700
        %v702 = vpop.f32.mrb[0].mxu0
        %703 = vmatprep.mubr.f32.mxu0 0.0
        %v704 = vand.u32 %v265, 4294901760
        %705 = vmatmul.mubr.f32.gmra.mrb[0].mxu0 %v704
        %v706 = vpop.f32.mrb[0].mxu0
        %v707 = vadd.f32 %v522, %v706
        %v708 = vpop.f32.mrb[0].mxu0
        %709 = vmatprep.mubr.f32.mxu0 0.0
        %v710 = vand.u32 %v267, 4294901760
        %711 = vmatmul.mubr.f32.gmra.mrb[0].mxu0 %v710
        %v712 = vpop.f32.mrb[0].mxu0
        %v713 = vadd.f32 %v532, %v712
        %v714 = vpop.f32.mrb[0].mxu0
        %715 = vmatprep.mubr.f32.mxu0 0.0
        %v716 = vand.u32 %v269, 4294901760
        %717 = vmatmul.mubr.f32.gmra.mrb[0].mxu0 %v716
        %v718 = vpop.f32.mrb[0].mxu0
        %v719 = vadd.f32 %v542, %v718
        %v720 = vpop.f32.mrb[0].mxu0
        %721 = vmatprep.mubr.f32.mxu0 0.0
        %v722 = vand.u32 %v271, 4294901760
        %723 = vmatmul.mubr.f32.gmra.mrb[0].mxu0 %v722
        %v724 = vpop.f32.mrb[0].mxu0
        %v725 = vadd.f32 %v552, %v724
        %v726 = vpop.f32.mrb[0].mxu0
        %727 = vmatprep.mubr.f32.mxu0 0.0
        %v728 = vand.u32 %v273, 4294901760
        %729 = vmatmul.mubr.f32.gmra.mrb[0].mxu0 %v728
        %v730 = vpop.f32.mrb[0].mxu0
        %v731 = vadd.f32 %v562, %v730
        %v732 = vpop.f32.mrb[0].mxu0
        %733 = vmatprep.mubr.f32.mxu0 0.0
        %v734 = vand.u32 %v275, 4294901760
        %735 = vmatmul.mubr.f32.gmra.mrb[0].mxu0 %v734
        %v736 = vpop.f32.mrb[0].mxu0
        %v737 = vadd.f32 %v572, %v736
        %v738 = vpop.f32.mrb[0].mxu0
        %739 = vmatprep.mubr.f32.mxu0 0.0
        %v740 = vand.u32 %v277, 4294901760
        %741 = vmatmul.mubr.f32.gmra.mrb[0].mxu0 %v740
        %v742 = vpop.f32.mrb[0].mxu0
        %v743 = vadd.f32 %v582, %v742
        %v744 = vpop.f32.mrb[0].mxu0
        %745 = vdwg.mxu0
        %746 = vmatprep.subr.mxu0 0.0
        %747 = vmatpush1.msra.mxu0 0.0
        %748 = vmatprep.subr.mxu0 0.0
        %749 = vmatpush1.msra.mxu0 0.0
        %750 = vmatprep.subr.mxu0 0.0
        %751 = vmatpush1.msra.mxu0 0.0
        %752 = vmatprep.subr.mxu0 0.0
        %753 = vmatpush1.msra.mxu0 0.0
        %754 = vmatprep.subr.mxu0 0.0
        %755 = vmatpush1.msra.mxu0 0.0
        %756 = vmatprep.subr.mxu0 0.0
        %757 = vmatpush1.msra.mxu0 0.0
        %758 = vmatprep.subr.mxu0 0.0
        %759 = vmatpush1.msra.mxu0 0.0
        %760 = vmatprep.subr.mxu0 0.0
        %761 = vmatpush1.msra.mxu0 0.0
        %762 = vmatprep.subr.mxu0 0.0
        %763 = vmatpush1.msra.mxu0 0.0
        %764 = vmatprep.subr.mxu0 0.0
        %765 = vmatpush1.msra.mxu0 0.0
        %766 = vmatprep.subr.mxu0 0.0
        %767 = vmatpush1.msra.mxu0 0.0
        %768 = vmatprep.subr.mxu0 0.0
        %769 = vmatpush1.msra.mxu0 0.0
        %770 = vmatprep.subr.mxu0 0.0
        %771 = vmatpush1.msra.mxu0 0.0
        %772 = vmatprep.subr.mxu0 0.0
        %773 = vmatpush1.msra.mxu0 0.0
        %774 = vmatprep.subr.mxu0 0.0
        %775 = vmatpush1.msra.mxu0 0.0
        %776 = vmatprep.subr.mxu0 0.0
        %777 = vmatpush1.msra.mxu0 0.0
        %778 = vmatprep.subr.mxu0 0.0
        %779 = vmatpush1.msra.mxu0 0.0
        %780 = vmatprep.subr.mxu0 0.0
        %781 = vmatpush1.msra.mxu0 0.0
        %782 = vmatprep.subr.mxu0 0.0
        %783 = vmatpush1.msra.mxu0 0.0
        %784 = vmatprep.subr.mxu0 0.0
        %785 = vmatpush1.msra.mxu0 0.0
        %786 = vmatprep.subr.mxu0 0.0
        %787 = vmatpush1.msra.mxu0 0.0
        %788 = vmatprep.subr.mxu0 0.0
        %789 = vmatpush1.msra.mxu0 0.0
        %790 = vmatprep.subr.mxu0 0.0
        %791 = vmatpush1.msra.mxu0 0.0
        %792 = vmatprep.subr.mxu0 0.0
        %793 = vmatpush1.msra.mxu0 0.0
        %794 = vmatprep.subr.mxu0 0.0
        %795 = vmatpush1.msra.mxu0 0.0
        %796 = vmatprep.subr.mxu0 0.0
        %797 = vmatpush1.msra.mxu0 0.0
        %798 = vmatprep.subr.mxu0 0.0
        %799 = vmatpush1.msra.mxu0 0.0
        %800 = vmatprep.subr.mxu0 0.0
        %801 = vmatpush1.msra.mxu0 0.0
        %802 = vmatprep.subr.mxu0 0.0
        %803 = vmatpush1.msra.mxu0 0.0
        %804 = vmatprep.subr.mxu0 0.0
        %805 = vmatpush1.msra.mxu0 0.0
        %806 = vmatprep.subr.mxu0 0.0
        %807 = vmatpush1.msra.mxu0 0.0
        %808 = vmatprep.subr.mxu0 0.0
        %809 = vmatpush1.msra.mxu0 0.0
        %810 = vmatprep.mubr.f32.mxu0 0.0
        %v811 = vand.u32 %v247, 4294901760
        %v812 = vsub.f32 %v247, %v811
        %813 = vmatmul.mubr.f32.gmra.mrb[0].mxu0 %v812
        %v814 = vpop.f32.mrb[0].mxu0
        %v815 = vadd.f32 %v653, %v814
        %v816 = vpop.f32.mrb[0].mxu0
        %817 = vmatprep.mubr.f32.mxu0 0.0
        %v818 = vand.u32 %v249, 4294901760
        %v819 = vsub.f32 %v249, %v818
        %820 = vmatmul.mubr.f32.gmra.mrb[0].mxu0 %v819
        %v821 = vpop.f32.mrb[0].mxu0
        %v822 = vadd.f32 %v659, %v821
        %v823 = vpop.f32.mrb[0].mxu0
        %824 = vmatprep.mubr.f32.mxu0 0.0
        %v825 = vand.u32 %v251, 4294901760
        %v826 = vsub.f32 %v251, %v825
        %827 = vmatmul.mubr.f32.gmra.mrb[0].mxu0 %v826
        %v828 = vpop.f32.mrb[0].mxu0
        %v829 = vadd.f32 %v665, %v828
        %v830 = vpop.f32.mrb[0].mxu0
        %831 = vmatprep.mubr.f32.mxu0 0.0
        %v832 = vand.u32 %v253, 4294901760
        %v833 = vsub.f32 %v253, %v832
        %834 = vmatmul.mubr.f32.gmra.mrb[0].mxu0 %v833
        %v835 = vpop.f32.mrb[0].mxu0
        %v836 = vadd.f32 %v671, %v835
        %v837 = vpop.f32.mrb[0].mxu0
        %838 = vmatprep.mubr.f32.mxu0 0.0
        %v839 = vand.u32 %v255, 4294901760
        %v840 = vsub.f32 %v255, %v839
        %841 = vmatmul.mubr.f32.gmra.mrb[0].mxu0 %v840
        %v842 = vpop.f32.mrb[0].mxu0
        %v843 = vadd.f32 %v677, %v842
        %v844 = vpop.f32.mrb[0].mxu0
        %845 = vmatprep.mubr.f32.mxu0 0.0
        %v846 = vand.u32 %v257, 4294901760
        %v847 = vsub.f32 %v257, %v846
        %848 = vmatmul.mubr.f32.gmra.mrb[0].mxu0 %v847
        %v849 = vpop.f32.mrb[0].mxu0
        %v850 = vadd.f32 %v683, %v849
        %v851 = vpop.f32.mrb[0].mxu0
        %852 = vmatprep.mubr.f32.mxu0 0.0
        %v853 = vand.u32 %v259, 4294901760
        %v854 = vsub.f32 %v259, %v853
        %855 = vmatmul.mubr.f32.gmra.mrb[0].mxu0 %v854
        %v856 = vpop.f32.mrb[0].mxu0
        %v857 = vadd.f32 %v689, %v856
        %v858 = vpop.f32.mrb[0].mxu0
        %859 = vmatprep.mubr.f32.mxu0 0.0
        %v860 = vand.u32 %v261, 4294901760
        %v861 = vsub.f32 %v261, %v860
        %862 = vmatmul.mubr.f32.gmra.mrb[0].mxu0 %v861
        %v863 = vpop.f32.mrb[0].mxu0
        %v864 = vadd.f32 %v695, %v863
        %v865 = vpop.f32.mrb[0].mxu0
        %866 = vmatprep.mubr.f32.mxu0 0.0
        %v867 = vand.u32 %v263, 4294901760
        %v868 = vsub.f32 %v263, %v867
        %869 = vmatmul.mubr.f32.gmra.mrb[0].mxu0 %v868
        %v870 = vpop.f32.mrb[0].mxu0
        %v871 = vadd.f32 %v701, %v870
        %v872 = vpop.f32.mrb[0].mxu0
        %873 = vmatprep.mubr.f32.mxu0 0.0
        %v874 = vand.u32 %v265, 4294901760
        %v875 = vsub.f32 %v265, %v874
        %876 = vmatmul.mubr.f32.gmra.mrb[0].mxu0 %v875
        %v877 = vpop.f32.mrb[0].mxu0
        %v878 = vadd.f32 %v707, %v877
        %v879 = vpop.f32.mrb[0].mxu0
        %880 = vmatprep.mubr.f32.mxu0 0.0
        %v881 = vand.u32 %v267, 4294901760
        %v882 = vsub.f32 %v267, %v881
        %883 = vmatmul.mubr.f32.gmra.mrb[0].mxu0 %v882
        %v884 = vpop.f32.mrb[0].mxu0
        %v885 = vadd.f32 %v713, %v884
        %v886 = vpop.f32.mrb[0].mxu0
        %887 = vmatprep.mubr.f32.mxu0 0.0
        %v888 = vand.u32 %v269, 4294901760
        %v889 = vsub.f32 %v269, %v888
        %890 = vmatmul.mubr.f32.gmra.mrb[0].mxu0 %v889
        %v891 = vpop.f32.mrb[0].mxu0
        %v892 = vadd.f32 %v719, %v891
        %v893 = vpop.f32.mrb[0].mxu0
        %894 = vmatprep.mubr.f32.mxu0 0.0
        %v895 = vand.u32 %v271, 4294901760
        %v896 = vsub.f32 %v271, %v895
        %897 = vmatmul.mubr.f32.gmra.mrb[0].mxu0 %v896
        %v898 = vpop.f32.mrb[0].mxu0
        %v899 = vadd.f32 %v725, %v898
        %v900 = vpop.f32.mrb[0].mxu0
        %901 = vmatprep.mubr.f32.mxu0 0.0
        %v902 = vand.u32 %v273, 4294901760
        %v903 = vsub.f32 %v273, %v902
        %904 = vmatmul.mubr.f32.gmra.mrb[0].mxu0 %v903
        %v905 = vpop.f32.mrb[0].mxu0
        %v906 = vadd.f32 %v731, %v905
        %v907 = vpop.f32.mrb[0].mxu0
        %908 = vmatprep.mubr.f32.mxu0 0.0
        %v909 = vand.u32 %v275, 4294901760
        %v910 = vsub.f32 %v275, %v909
        %911 = vmatmul.mubr.f32.gmra.mrb[0].mxu0 %v910
        %v912 = vpop.f32.mrb[0].mxu0
        %v913 = vadd.f32 %v737, %v912
        %v914 = vpop.f32.mrb[0].mxu0
        %915 = vmatprep.mubr.f32.mxu0 0.0
        %v916 = vand.u32 %v277, 4294901760
        %v917 = vsub.f32 %v277, %v916
        %918 = vmatmul.mubr.f32.gmra.mrb[0].mxu0 %v917
        %v919 = vpop.f32.mrb[0].mxu0
        %v920 = vadd.f32 %v743, %v919
        %v921 = vpop.f32.mrb[0].mxu0
        %922 = vdwg.mxu0
        %923 = vmatprep.subr.mxu0 0.0
        %924 = vmatpush1.msra.mxu0 1.0
        %925 = vmatprep.subr.mxu0 0.0
        %926 = vmatpush1.msra.mxu0 1.0
        %927 = vmatprep.subr.mxu0 0.0
        %928 = vmatpush1.msra.mxu0 1.0
        %929 = vmatprep.subr.mxu0 0.0
        %930 = vmatpush1.msra.mxu0 1.0
        %931 = vmatprep.subr.mxu0 0.0
        %932 = vmatpush1.msra.mxu0 1.0
        %933 = vmatprep.subr.mxu0 0.0
        %934 = vmatpush1.msra.mxu0 1.0
        %935 = vmatprep.subr.mxu0 0.0
        %936 = vmatpush1.msra.mxu0 1.0
        %937 = vmatprep.subr.mxu0 0.0
        %938 = vmatpush1.msra.mxu0 1.0
        %939 = vmatprep.subr.mxu0 0.0
        %940 = vmatpush1.msra.mxu0 1.0
        %941 = vmatprep.subr.mxu0 0.0
        %942 = vmatpush1.msra.mxu0 1.0
        %943 = vmatprep.subr.mxu0 0.0
        %944 = vmatpush1.msra.mxu0 1.0
        %945 = vmatprep.subr.mxu0 0.0
        %946 = vmatpush1.msra.mxu0 1.0
        %947 = vmatprep.subr.mxu0 0.0
        %948 = vmatpush1.msra.mxu0 1.0
        %949 = vmatprep.subr.mxu0 0.0
        %950 = vmatpush1.msra.mxu0 1.0
        %951 = vmatprep.subr.mxu0 0.0
        %952 = vmatpush1.msra.mxu0 1.0
        %953 = vmatprep.subr.mxu0 0.0
        %954 = vmatpush1.msra.mxu0 1.0
        %955 = vmatprep.subr.mxu0 0.0
        %956 = vmatpush1.msra.mxu0 0.0
        %957 = vmatprep.subr.mxu0 0.0
        %958 = vmatpush1.msra.mxu0 0.0
        %959 = vmatprep.subr.mxu0 0.0
        %960 = vmatpush1.msra.mxu0 0.0
        %961 = vmatprep.subr.mxu0 0.0
        %962 = vmatpush1.msra.mxu0 0.0
        %963 = vmatprep.subr.mxu0 0.0
        %964 = vmatpush1.msra.mxu0 0.0
        %965 = vmatprep.subr.mxu0 0.0
        %966 = vmatpush1.msra.mxu0 0.0
        %967 = vmatprep.subr.mxu0 0.0
        %968 = vmatpush1.msra.mxu0 0.0
        %969 = vmatprep.subr.mxu0 0.0
        %970 = vmatpush1.msra.mxu0 0.0
        %971 = vmatprep.subr.mxu0 0.0
        %972 = vmatpush1.msra.mxu0 0.0
        %973 = vmatprep.subr.mxu0 0.0
        %974 = vmatpush1.msra.mxu0 0.0
        %975 = vmatprep.subr.mxu0 0.0
        %976 = vmatpush1.msra.mxu0 0.0
        %977 = vmatprep.subr.mxu0 0.0
        %978 = vmatpush1.msra.mxu0 0.0
        %979 = vmatprep.subr.mxu0 0.0
        %980 = vmatpush1.msra.mxu0 0.0
        %981 = vmatprep.subr.mxu0 0.0
        %982 = vmatpush1.msra.mxu0 0.0
        %983 = vmatprep.subr.mxu0 0.0
        %984 = vmatpush1.msra.mxu0 0.0
        %985 = vmatprep.subr.mxu0 0.0
        %986 = vmatpush1.msra.mxu0 0.0
        %987 = vmatprep.mubr.f32.mxu0 0.0
        %v988 = vand.u32 %v247, 4294901760
        %v989 = vsub.f32 %v247, %v988
        %v990 = vand.u32 %v989, 4294901760
        %991 = vmatmul.mubr.f32.gmra.mrb[0].mxu0 %v990
        %v992 = vpop.f32.mrb[0].mxu0
        %v993 = vadd.f32 %v815, %v992
        %v994 = vpop.f32.mrb[0].mxu0
        %995 = vmatprep.mubr.f32.mxu0 0.0
        %v996 = vand.u32 %v249, 4294901760
        %v997 = vsub.f32 %v249, %v996
        %v998 = vand.u32 %v997, 4294901760
        %999 = vmatmul.mubr.f32.gmra.mrb[0].mxu0 %v998
        %v1000 = vpop.f32.mrb[0].mxu0
        %v1001 = vadd.f32 %v822, %v1000
        %v1002 = vpop.f32.mrb[0].mxu0
        %1003 = vmatprep.mubr.f32.mxu0 0.0
        %v1004 = vand.u32 %v251, 4294901760
        %v1005 = vsub.f32 %v251, %v1004
        %v1006 = vand.u32 %v1005, 4294901760
        %1007 = vmatmul.mubr.f32.gmra.mrb[0].mxu0 %v1006
        %v1008 = vpop.f32.mrb[0].mxu0
        %v1009 = vadd.f32 %v829, %v1008
        %v1010 = vpop.f32.mrb[0].mxu0
        %1011 = vmatprep.mubr.f32.mxu0 0.0
        %v1012 = vand.u32 %v253, 4294901760
        %v1013 = vsub.f32 %v253, %v1012
        %v1014 = vand.u32 %v1013, 4294901760
        %1015 = vmatmul.mubr.f32.gmra.mrb[0].mxu0 %v1014
        %v1016 = vpop.f32.mrb[0].mxu0
        %v1017 = vadd.f32 %v836, %v1016
        %v1018 = vpop.f32.mrb[0].mxu0
        %1019 = vmatprep.mubr.f32.mxu0 0.0
        %v1020 = vand.u32 %v255, 4294901760
        %v1021 = vsub.f32 %v255, %v1020
        %v1022 = vand.u32 %v1021, 4294901760
        %1023 = vmatmul.mubr.f32.gmra.mrb[0].mxu0 %v1022
        %v1024 = vpop.f32.mrb[0].mxu0
        %v1025 = vadd.f32 %v843, %v1024
        %v1026 = vpop.f32.mrb[0].mxu0
        %1027 = vmatprep.mubr.f32.mxu0 0.0
        %v1028 = vand.u32 %v257, 4294901760
        %v1029 = vsub.f32 %v257, %v1028
        %v1030 = vand.u32 %v1029, 4294901760
        %1031 = vmatmul.mubr.f32.gmra.mrb[0].mxu0 %v1030
        %v1032 = vpop.f32.mrb[0].mxu0
        %v1033 = vadd.f32 %v850, %v1032
        %v1034 = vpop.f32.mrb[0].mxu0
        %1035 = vmatprep.mubr.f32.mxu0 0.0
        %v1036 = vand.u32 %v259, 4294901760
        %v1037 = vsub.f32 %v259, %v1036
        %v1038 = vand.u32 %v1037, 4294901760
        %1039 = vmatmul.mubr.f32.gmra.mrb[0].mxu0 %v1038
        %v1040 = vpop.f32.mrb[0].mxu0
        %v1041 = vadd.f32 %v857, %v1040
        %v1042 = vpop.f32.mrb[0].mxu0
        %1043 = vmatprep.mubr.f32.mxu0 0.0
        %v1044 = vand.u32 %v261, 4294901760
        %v1045 = vsub.f32 %v261, %v1044
        %v1046 = vand.u32 %v1045, 4294901760
        %1047 = vmatmul.mubr.f32.gmra.mrb[0].mxu0 %v1046
        %v1048 = vpop.f32.mrb[0].mxu0
        %v1049 = vadd.f32 %v864, %v1048
        %v1050 = vpop.f32.mrb[0].mxu0
        %1051 = vmatprep.mubr.f32.mxu0 0.0
        %v1052 = vand.u32 %v263, 4294901760
        %v1053 = vsub.f32 %v263, %v1052
        %v1054 = vand.u32 %v1053, 4294901760
        %1055 = vmatmul.mubr.f32.gmra.mrb[0].mxu0 %v1054
        %v1056 = vpop.f32.mrb[0].mxu0
        %v1057 = vadd.f32 %v871, %v1056
        %v1058 = vpop.f32.mrb[0].mxu0
        %1059 = vmatprep.mubr.f32.mxu0 0.0
        %v1060 = vand.u32 %v265, 4294901760
        %v1061 = vsub.f32 %v265, %v1060
        %v1062 = vand.u32 %v1061, 4294901760
        %1063 = vmatmul.mubr.f32.gmra.mrb[0].mxu0 %v1062
        %v1064 = vpop.f32.mrb[0].mxu0
        %v1065 = vadd.f32 %v878, %v1064
        %v1066 = vpop.f32.mrb[0].mxu0
        %1067 = vmatprep.mubr.f32.mxu0 0.0
        %v1068 = vand.u32 %v267, 4294901760
        %v1069 = vsub.f32 %v267, %v1068
        %v1070 = vand.u32 %v1069, 4294901760
        %1071 = vmatmul.mubr.f32.gmra.mrb[0].mxu0 %v1070
        %v1072 = vpop.f32.mrb[0].mxu0
        %v1073 = vadd.f32 %v885, %v1072
        %v1074 = vpop.f32.mrb[0].mxu0
        %1075 = vmatprep.mubr.f32.mxu0 0.0
        %v1076 = vand.u32 %v269, 4294901760
        %v1077 = vsub.f32 %v269, %v1076
        %v1078 = vand.u32 %v1077, 4294901760
        %1079 = vmatmul.mubr.f32.gmra.mrb[0].mxu0 %v1078
        %v1080 = vpop.f32.mrb[0].mxu0
        %v1081 = vadd.f32 %v892, %v1080
        %v1082 = vpop.f32.mrb[0].mxu0
        %1083 = vmatprep.mubr.f32.mxu0 0.0
        %v1084 = vand.u32 %v271, 4294901760
        %v1085 = vsub.f32 %v271, %v1084
        %v1086 = vand.u32 %v1085, 4294901760
        %1087 = vmatmul.mubr.f32.gmra.mrb[0].mxu0 %v1086
        %v1088 = vpop.f32.mrb[0].mxu0
        %v1089 = vadd.f32 %v899, %v1088
        %v1090 = vpop.f32.mrb[0].mxu0
        %1091 = vmatprep.mubr.f32.mxu0 0.0
        %v1092 = vand.u32 %v273, 4294901760
        %v1093 = vsub.f32 %v273, %v1092
        %v1094 = vand.u32 %v1093, 4294901760
        %1095 = vmatmul.mubr.f32.gmra.mrb[0].mxu0 %v1094
        %v1096 = vpop.f32.mrb[0].mxu0
        %v1097 = vadd.f32 %v906, %v1096
        %v1098 = vpop.f32.mrb[0].mxu0
        %1099 = vmatprep.mubr.f32.mxu0 0.0
        %v1100 = vand.u32 %v275, 4294901760
        %v1101 = vsub.f32 %v275, %v1100
        %v1102 = vand.u32 %v1101, 4294901760
        %1103 = vmatmul.mubr.f32.gmra.mrb[0].mxu0 %v1102
        %v1104 = vpop.f32.mrb[0].mxu0
        %v1105 = vadd.f32 %v913, %v1104
        %v1106 = vpop.f32.mrb[0].mxu0
        %1107 = vmatprep.mubr.f32.mxu0 0.0
        %v1108 = vand.u32 %v277, 4294901760
        %v1109 = vsub.f32 %v277, %v1108
        %v1110 = vand.u32 %v1109, 4294901760
        %1111 = vmatmul.mubr.f32.gmra.mrb[0].mxu0 %v1110
        %v1112 = vpop.f32.mrb[0].mxu0
        %v1113 = vadd.f32 %v920, %v1112
        %v1114 = vpop.f32.mrb[0].mxu0
        %1115 = vdwg.mxu0
        %1116 = vmatprep.subr.mxu0 0.0
        %1117 = vmatpush1.msra.mxu0 0.0
        %1118 = vmatprep.subr.mxu0 0.0
        %1119 = vmatpush1.msra.mxu0 0.0
        %1120 = vmatprep.subr.mxu0 0.0
        %1121 = vmatpush1.msra.mxu0 0.0
        %1122 = vmatprep.subr.mxu0 0.0
        %1123 = vmatpush1.msra.mxu0 0.0
        %1124 = vmatprep.subr.mxu0 0.0
        %1125 = vmatpush1.msra.mxu0 0.0
        %1126 = vmatprep.subr.mxu0 0.0
        %1127 = vmatpush1.msra.mxu0 0.0
        %1128 = vmatprep.subr.mxu0 0.0
        %1129 = vmatpush1.msra.mxu0 0.0
        %1130 = vmatprep.subr.mxu0 0.0
        %1131 = vmatpush1.msra.mxu0 0.0
        %1132 = vmatprep.subr.mxu0 0.0
        %1133 = vmatpush1.msra.mxu0 0.0
        %1134 = vmatprep.subr.mxu0 0.0
        %1135 = vmatpush1.msra.mxu0 0.0
        %1136 = vmatprep.subr.mxu0 0.0
        %1137 = vmatpush1.msra.mxu0 0.0
        %1138 = vmatprep.subr.mxu0 0.0
        %1139 = vmatpush1.msra.mxu0 0.0
        %1140 = vmatprep.subr.mxu0 0.0
        %1141 = vmatpush1.msra.mxu0 0.0
        %1142 = vmatprep.subr.mxu0 0.0
        %1143 = vmatpush1.msra.mxu0 0.0
        %1144 = vmatprep.subr.mxu0 0.0
        %1145 = vmatpush1.msra.mxu0 0.0
        %1146 = vmatprep.subr.mxu0 0.0
        %1147 = vmatpush1.msra.mxu0 0.0
        %1148 = vmatprep.subr.mxu0 0.0
        %1149 = vmatpush1.msra.mxu0 0.0
        %1150 = vmatprep.subr.mxu0 0.0
        %1151 = vmatpush1.msra.mxu0 0.0
        %1152 = vmatprep.subr.mxu0 0.0
        %1153 = vmatpush1.msra.mxu0 0.0
        %1154 = vmatprep.subr.mxu0 0.0
        %1155 = vmatpush1.msra.mxu0 0.0
        %1156 = vmatprep.subr.mxu0 0.0
        %1157 = vmatpush1.msra.mxu0 0.0
        %1158 = vmatprep.subr.mxu0 0.0
        %1159 = vmatpush1.msra.mxu0 0.0
        %1160 = vmatprep.subr.mxu0 0.0
        %1161 = vmatpush1.msra.mxu0 0.0
        %1162 = vmatprep.subr.mxu0 0.0
        %1163 = vmatpush1.msra.mxu0 0.0
        %1164 = vmatprep.subr.mxu0 0.0
        %1165 = vmatpush1.msra.mxu0 0.0
        %1166 = vmatprep.subr.mxu0 0.0
        %1167 = vmatpush1.msra.mxu0 0.0
        %1168 = vmatprep.subr.mxu0 0.0
        %1169 = vmatpush1.msra.mxu0 0.0
        %1170 = vmatprep.subr.mxu0 0.0
        %1171 = vmatpush1.msra.mxu0 0.0
        %1172 = vmatprep.subr.mxu0 0.0
        %1173 = vmatpush1.msra.mxu0 0.0
        %1174 = vmatprep.subr.mxu0 0.0
        %1175 = vmatpush1.msra.mxu0 0.0
        %1176 = vmatprep.subr.mxu0 0.0
        %1177 = vmatpush1.msra.mxu0 0.0
        %1178 = vmatprep.subr.mxu0 0.0
        %1179 = vmatpush1.msra.mxu0 0.0
        %1180 = vmatprep.mubr.f32.mxu0 0.0
        %v1181 = vand.u32 %v247, 4294901760
        %1182 = vmatmul.mubr.f32.gmra.mrb[0].mxu0 %v1181
        %v1183 = vpop.f32.mrb[0].mxu0
        %v1184 = vadd.f32 %v993, %v1183
        %v1185 = vpop.f32.mrb[0].mxu0
        %1186 = vmatprep.mubr.f32.mxu0 0.0
        %v1187 = vand.u32 %v249, 4294901760
        %1188 = vmatmul.mubr.f32.gmra.mrb[0].mxu0 %v1187
        %v1189 = vpop.f32.mrb[0].mxu0
        %v1190 = vadd.f32 %v1001, %v1189
        %v1191 = vpop.f32.mrb[0].mxu0
        %1192 = vmatprep.mubr.f32.mxu0 0.0
        %v1193 = vand.u32 %v251, 4294901760
        %1194 = vmatmul.mubr.f32.gmra.mrb[0].mxu0 %v1193
        %v1195 = vpop.f32.mrb[0].mxu0
        %v1196 = vadd.f32 %v1009, %v1195
        %v1197 = vpop.f32.mrb[0].mxu0
        %1198 = vmatprep.mubr.f32.mxu0 0.0
        %v1199 = vand.u32 %v253, 4294901760
        %1200 = vmatmul.mubr.f32.gmra.mrb[0].mxu0 %v1199
        %v1201 = vpop.f32.mrb[0].mxu0
        %v1202 = vadd.f32 %v1017, %v1201
        %v1203 = vpop.f32.mrb[0].mxu0
        %1204 = vmatprep.mubr.f32.mxu0 0.0
        %v1205 = vand.u32 %v255, 4294901760
        %1206 = vmatmul.mubr.f32.gmra.mrb[0].mxu0 %v1205
        %v1207 = vpop.f32.mrb[0].mxu0
        %v1208 = vadd.f32 %v1025, %v1207
        %v1209 = vpop.f32.mrb[0].mxu0
        %1210 = vmatprep.mubr.f32.mxu0 0.0
        %v1211 = vand.u32 %v257, 4294901760
        %1212 = vmatmul.mubr.f32.gmra.mrb[0].mxu0 %v1211
        %v1213 = vpop.f32.mrb[0].mxu0
        %v1214 = vadd.f32 %v1033, %v1213
        %v1215 = vpop.f32.mrb[0].mxu0
        %1216 = vmatprep.mubr.f32.mxu0 0.0
        %v1217 = vand.u32 %v259, 4294901760
        %1218 = vmatmul.mubr.f32.gmra.mrb[0].mxu0 %v1217
        %v1219 = vpop.f32.mrb[0].mxu0
        %v1220 = vadd.f32 %v1041, %v1219
        %v1221 = vpop.f32.mrb[0].mxu0
        %1222 = vmatprep.mubr.f32.mxu0 0.0
        %v1223 = vand.u32 %v261, 4294901760
        %1224 = vmatmul.mubr.f32.gmra.mrb[0].mxu0 %v1223
        %v1225 = vpop.f32.mrb[0].mxu0
        %v1226 = vadd.f32 %v1049, %v1225
        %v1227 = vpop.f32.mrb[0].mxu0
        %1228 = vmatprep.mubr.f32.mxu0 0.0
        %v1229 = vand.u32 %v263, 4294901760
        %1230 = vmatmul.mubr.f32.gmra.mrb[0].mxu0 %v1229
        %v1231 = vpop.f32.mrb[0].mxu0
        %v1232 = vadd.f32 %v1057, %v1231
        %v1233 = vpop.f32.mrb[0].mxu0
        %1234 = vmatprep.mubr.f32.mxu0 0.0
        %v1235 = vand.u32 %v265, 4294901760
        %1236 = vmatmul.mubr.f32.gmra.mrb[0].mxu0 %v1235
        %v1237 = vpop.f32.mrb[0].mxu0
        %v1238 = vadd.f32 %v1065, %v1237
        %v1239 = vpop.f32.mrb[0].mxu0
        %1240 = vmatprep.mubr.f32.mxu0 0.0
        %v1241 = vand.u32 %v267, 4294901760
        %1242 = vmatmul.mubr.f32.gmra.mrb[0].mxu0 %v1241
        %v1243 = vpop.f32.mrb[0].mxu0
        %v1244 = vadd.f32 %v1073, %v1243
        %v1245 = vpop.f32.mrb[0].mxu0
        %1246 = vmatprep.mubr.f32.mxu0 0.0
        %v1247 = vand.u32 %v269, 4294901760
        %1248 = vmatmul.mubr.f32.gmra.mrb[0].mxu0 %v1247
        %v1249 = vpop.f32.mrb[0].mxu0
        %v1250 = vadd.f32 %v1081, %v1249
        %v1251 = vpop.f32.mrb[0].mxu0
        %1252 = vmatprep.mubr.f32.mxu0 0.0
        %v1253 = vand.u32 %v271, 4294901760
        %1254 = vmatmul.mubr.f32.gmra.mrb[0].mxu0 %v1253
        %v1255 = vpop.f32.mrb[0].mxu0
        %v1256 = vadd.f32 %v1089, %v1255
        %v1257 = vpop.f32.mrb[0].mxu0
        %1258 = vmatprep.mubr.f32.mxu0 0.0
        %v1259 = vand.u32 %v273, 4294901760
        %1260 = vmatmul.mubr.f32.gmra.mrb[0].mxu0 %v1259
        %v1261 = vpop.f32.mrb[0].mxu0
        %v1262 = vadd.f32 %v1097, %v1261
        %v1263 = vpop.f32.mrb[0].mxu0
        %1264 = vmatprep.mubr.f32.mxu0 0.0
        %v1265 = vand.u32 %v275, 4294901760
        %1266 = vmatmul.mubr.f32.gmra.mrb[0].mxu0 %v1265
        %v1267 = vpop.f32.mrb[0].mxu0
        %v1268 = vadd.f32 %v1105, %v1267
        %v1269 = vpop.f32.mrb[0].mxu0
        %1270 = vmatprep.mubr.f32.mxu0 0.0
        %v1271 = vand.u32 %v277, 4294901760
        %1272 = vmatmul.mubr.f32.gmra.mrb[0].mxu0 %v1271
        %v1273 = vpop.f32.mrb[0].mxu0
        %v1274 = vadd.f32 %v1113, %v1273
        %v1275 = vpop.f32.mrb[0].mxu0
        %1276 = vdwg.mxu0
        %1277 = vmatprep.subr.mxu0 0.0
        %1278 = vmatpush1.msra.mxu0 1.0
        %1279 = vmatprep.subr.mxu0 0.0
        %1280 = vmatpush1.msra.mxu0 1.0
        %1281 = vmatprep.subr.mxu0 0.0
        %1282 = vmatpush1.msra.mxu0 1.0
        %1283 = vmatprep.subr.mxu0 0.0
        %1284 = vmatpush1.msra.mxu0 1.0
        %1285 = vmatprep.subr.mxu0 0.0
        %1286 = vmatpush1.msra.mxu0 1.0
        %1287 = vmatprep.subr.mxu0 0.0
        %1288 = vmatpush1.msra.mxu0 1.0
        %1289 = vmatprep.subr.mxu0 0.0
        %1290 = vmatpush1.msra.mxu0 1.0
        %1291 = vmatprep.subr.mxu0 0.0
        %1292 = vmatpush1.msra.mxu0 1.0
        %1293 = vmatprep.subr.mxu0 0.0
        %1294 = vmatpush1.msra.mxu0 1.0
        %1295 = vmatprep.subr.mxu0 0.0
        %1296 = vmatpush1.msra.mxu0 1.0
        %1297 = vmatprep.subr.mxu0 0.0
        %1298 = vmatpush1.msra.mxu0 1.0
        %1299 = vmatprep.subr.mxu0 0.0
        %1300 = vmatpush1.msra.mxu0 1.0
        %1301 = vmatprep.subr.mxu0 0.0
        %1302 = vmatpush1.msra.mxu0 1.0
        %1303 = vmatprep.subr.mxu0 0.0
        %1304 = vmatpush1.msra.mxu0 1.0
        %1305 = vmatprep.subr.mxu0 0.0
        %1306 = vmatpush1.msra.mxu0 1.0
        %1307 = vmatprep.subr.mxu0 0.0
        %1308 = vmatpush1.msra.mxu0 1.0
        %1309 = vmatprep.subr.mxu0 0.0
        %1310 = vmatpush1.msra.mxu0 0.0
        %1311 = vmatprep.subr.mxu0 0.0
        %1312 = vmatpush1.msra.mxu0 0.0
        %1313 = vmatprep.subr.mxu0 0.0
        %1314 = vmatpush1.msra.mxu0 0.0
        %1315 = vmatprep.subr.mxu0 0.0
        %1316 = vmatpush1.msra.mxu0 0.0
        %1317 = vmatprep.subr.mxu0 0.0
        %1318 = vmatpush1.msra.mxu0 0.0
        %1319 = vmatprep.subr.mxu0 0.0
        %1320 = vmatpush1.msra.mxu0 0.0
        %1321 = vmatprep.subr.mxu0 0.0
        %1322 = vmatpush1.msra.mxu0 0.0
        %1323 = vmatprep.subr.mxu0 0.0
        %1324 = vmatpush1.msra.mxu0 0.0
        %1325 = vmatprep.subr.mxu0 0.0
        %1326 = vmatpush1.msra.mxu0 0.0
        %1327 = vmatprep.subr.mxu0 0.0
        %1328 = vmatpush1.msra.mxu0 0.0
        %1329 = vmatprep.subr.mxu0 0.0
        %1330 = vmatpush1.msra.mxu0 0.0
        %1331 = vmatprep.subr.mxu0 0.0
        %1332 = vmatpush1.msra.mxu0 0.0
        %1333 = vmatprep.subr.mxu0 0.0
        %1334 = vmatpush1.msra.mxu0 0.0
        %1335 = vmatprep.subr.mxu0 0.0
        %1336 = vmatpush1.msra.mxu0 0.0
        %1337 = vmatprep.subr.mxu0 0.0
        %1338 = vmatpush1.msra.mxu0 0.0
        %1339 = vmatprep.subr.mxu0 0.0
        %1340 = vmatpush1.msra.mxu0 0.0
        %1341 = vmatprep.mubr.f32.mxu0 0.0
        %v1342 = vand.u32 %v247, 4294901760
        %1343 = vmatmul.mubr.f32.gmra.mrb[0].mxu0 %v1342
        %v1344 = vpop.f32.mrb[0].mxu0
        %v1345 = vadd.f32 %v1184, %v1344
        %v1346 = vpop.f32.mrb[0].mxu0
        %1347 = vmatprep.mubr.f32.mxu0 0.0
        %v1348 = vand.u32 %v249, 4294901760
        %1349 = vmatmul.mubr.f32.gmra.mrb[0].mxu0 %v1348
        %v1350 = vpop.f32.mrb[0].mxu0
        %v1351 = vadd.f32 %v1190, %v1350
        %v1352 = vpop.f32.mrb[0].mxu0
        %1353 = vmatprep.mubr.f32.mxu0 0.0
        %v1354 = vand.u32 %v251, 4294901760
        %1355 = vmatmul.mubr.f32.gmra.mrb[0].mxu0 %v1354
        %v1356 = vpop.f32.mrb[0].mxu0
        %v1357 = vadd.f32 %v1196, %v1356
        %v1358 = vpop.f32.mrb[0].mxu0
        %1359 = vmatprep.mubr.f32.mxu0 0.0
        %v1360 = vand.u32 %v253, 4294901760
        %1361 = vmatmul.mubr.f32.gmra.mrb[0].mxu0 %v1360
        %v1362 = vpop.f32.mrb[0].mxu0
        %v1363 = vadd.f32 %v1202, %v1362
        %v1364 = vpop.f32.mrb[0].mxu0
        %1365 = vmatprep.mubr.f32.mxu0 0.0
        %v1366 = vand.u32 %v255, 4294901760
        %1367 = vmatmul.mubr.f32.gmra.mrb[0].mxu0 %v1366
        %v1368 = vpop.f32.mrb[0].mxu0
        %v1369 = vadd.f32 %v1208, %v1368
        %v1370 = vpop.f32.mrb[0].mxu0
        %1371 = vmatprep.mubr.f32.mxu0 0.0
        %v1372 = vand.u32 %v257, 4294901760
        %1373 = vmatmul.mubr.f32.gmra.mrb[0].mxu0 %v1372
        %v1374 = vpop.f32.mrb[0].mxu0
        %v1375 = vadd.f32 %v1214, %v1374
        %v1376 = vpop.f32.mrb[0].mxu0
        %1377 = vmatprep.mubr.f32.mxu0 0.0
        %v1378 = vand.u32 %v259, 4294901760
        %1379 = vmatmul.mubr.f32.gmra.mrb[0].mxu0 %v1378
        %v1380 = vpop.f32.mrb[0].mxu0
        %v1381 = vadd.f32 %v1220, %v1380
        %v1382 = vpop.f32.mrb[0].mxu0
        %1383 = vmatprep.mubr.f32.mxu0 0.0
        %v1384 = vand.u32 %v261, 4294901760
        %1385 = vmatmul.mubr.f32.gmra.mrb[0].mxu0 %v1384
        %v1386 = vpop.f32.mrb[0].mxu0
        %v1387 = vadd.f32 %v1226, %v1386
        %v1388 = vpop.f32.mrb[0].mxu0
        %1389 = vmatprep.mubr.f32.mxu0 0.0
        %v1390 = vand.u32 %v263, 4294901760
        %1391 = vmatmul.mubr.f32.gmra.mrb[0].mxu0 %v1390
        %v1392 = vpop.f32.mrb[0].mxu0
        %v1393 = vadd.f32 %v1232, %v1392
        %v1394 = vpop.f32.mrb[0].mxu0
        %1395 = vmatprep.mubr.f32.mxu0 0.0
        %v1396 = vand.u32 %v265, 4294901760
        %1397 = vmatmul.mubr.f32.gmra.mrb[0].mxu0 %v1396
        %v1398 = vpop.f32.mrb[0].mxu0
        %v1399 = vadd.f32 %v1238, %v1398
        %v1400 = vpop.f32.mrb[0].mxu0
        %1401 = vmatprep.mubr.f32.mxu0 0.0
        %v1402 = vand.u32 %v267, 4294901760
        %1403 = vmatmul.mubr.f32.gmra.mrb[0].mxu0 %v1402
        %v1404 = vpop.f32.mrb[0].mxu0
        %v1405 = vadd.f32 %v1244, %v1404
        %v1406 = vpop.f32.mrb[0].mxu0
        %1407 = vmatprep.mubr.f32.mxu0 0.0
        %v1408 = vand.u32 %v269, 4294901760
        %1409 = vmatmul.mubr.f32.gmra.mrb[0].mxu0 %v1408
        %v1410 = vpop.f32.mrb[0].mxu0
        %v1411 = vadd.f32 %v1250, %v1410
        %v1412 = vpop.f32.mrb[0].mxu0
        %1413 = vmatprep.mubr.f32.mxu0 0.0
        %v1414 = vand.u32 %v271, 4294901760
        %1415 = vmatmul.mubr.f32.gmra.mrb[0].mxu0 %v1414
        %v1416 = vpop.f32.mrb[0].mxu0
        %v1417 = vadd.f32 %v1256, %v1416
        %v1418 = vpop.f32.mrb[0].mxu0
        %1419 = vmatprep.mubr.f32.mxu0 0.0
        %v1420 = vand.u32 %v273, 4294901760
        %1421 = vmatmul.mubr.f32.gmra.mrb[0].mxu0 %v1420
        %v1422 = vpop.f32.mrb[0].mxu0
        %v1423 = vadd.f32 %v1262, %v1422
        %v1424 = vpop.f32.mrb[0].mxu0
        %1425 = vmatprep.mubr.f32.mxu0 0.0
        %v1426 = vand.u32 %v275, 4294901760
        %1427 = vmatmul.mubr.f32.gmra.mrb[0].mxu0 %v1426
        %v1428 = vpop.f32.mrb[0].mxu0
        %v1429 = vadd.f32 %v1268, %v1428
        %v1430 = vpop.f32.mrb[0].mxu0
        %1431 = vmatprep.mubr.f32.mxu0 0.0
        %v1432 = vand.u32 %v277, 4294901760
        %1433 = vmatmul.mubr.f32.gmra.mrb[0].mxu0 %v1432
        %v1434 = vpop.f32.mrb[0].mxu0
        %v1435 = vadd.f32 %v1274, %v1434
        %v1436 = vpop.f32.mrb[0].mxu0
        %1437 = vdwg.mxu0
        %1438 = vmatprep.subr.mxu0 0.0
        %1439 = vmatpush1.msra.mxu0 1.0
        %1440 = vmatprep.subr.mxu0 0.0
        %1441 = vmatpush1.msra.mxu0 1.0
        %1442 = vmatprep.subr.mxu0 0.0
        %1443 = vmatpush1.msra.mxu0 1.0
        %1444 = vmatprep.subr.mxu0 0.0
        %1445 = vmatpush1.msra.mxu0 1.0
        %1446 = vmatprep.subr.mxu0 0.0
        %1447 = vmatpush1.msra.mxu0 1.0
        %1448 = vmatprep.subr.mxu0 0.0
        %1449 = vmatpush1.msra.mxu0 1.0
        %1450 = vmatprep.subr.mxu0 0.0
        %1451 = vmatpush1.msra.mxu0 1.0
        %1452 = vmatprep.subr.mxu0 0.0
        %1453 = vmatpush1.msra.mxu0 1.0
        %1454 = vmatprep.subr.mxu0 0.0
        %1455 = vmatpush1.msra.mxu0 1.0
        %1456 = vmatprep.subr.mxu0 0.0
        %1457 = vmatpush1.msra.mxu0 1.0
        %1458 = vmatprep.subr.mxu0 0.0
        %1459 = vmatpush1.msra.mxu0 1.0
        %1460 = vmatprep.subr.mxu0 0.0
        %1461 = vmatpush1.msra.mxu0 1.0
        %1462 = vmatprep.subr.mxu0 0.0
        %1463 = vmatpush1.msra.mxu0 1.0
        %1464 = vmatprep.subr.mxu0 0.0
        %1465 = vmatpush1.msra.mxu0 1.0
        %1466 = vmatprep.subr.mxu0 0.0
        %1467 = vmatpush1.msra.mxu0 1.0
        %1468 = vmatprep.subr.mxu0 0.0
        %1469 = vmatpush1.msra.mxu0 1.0
        %1470 = vmatprep.subr.mxu0 0.0
        %1471 = vmatpush1.msra.mxu0 0.0
        %1472 = vmatprep.subr.mxu0 0.0
        %1473 = vmatpush1.msra.mxu0 0.0
        %1474 = vmatprep.subr.mxu0 0.0
        %1475 = vmatpush1.msra.mxu0 0.0
        %1476 = vmatprep.subr.mxu0 0.0
        %1477 = vmatpush1.msra.mxu0 0.0
        %1478 = vmatprep.subr.mxu0 0.0
        %1479 = vmatpush1.msra.mxu0 0.0
        %1480 = vmatprep.subr.mxu0 0.0
        %1481 = vmatpush1.msra.mxu0 0.0
        %1482 = vmatprep.subr.mxu0 0.0
        %1483 = vmatpush1.msra.mxu0 0.0
        %1484 = vmatprep.subr.mxu0 0.0
        %1485 = vmatpush1.msra.mxu0 0.0
        %1486 = vmatprep.subr.mxu0 0.0
        %1487 = vmatpush1.msra.mxu0 0.0
        %1488 = vmatprep.subr.mxu0 0.0
        %1489 = vmatpush1.msra.mxu0 0.0
        %1490 = vmatprep.subr.mxu0 0.0
        %1491 = vmatpush1.msra.mxu0 0.0
        %1492 = vmatprep.subr.mxu0 0.0
        %1493 = vmatpush1.msra.mxu0 0.0
        %1494 = vmatprep.subr.mxu0 0.0
        %1495 = vmatpush1.msra.mxu0 0.0
        %1496 = vmatprep.subr.mxu0 0.0
        %1497 = vmatpush1.msra.mxu0 0.0
        %1498 = vmatprep.subr.mxu0 0.0
        %1499 = vmatpush1.msra.mxu0 0.0
        %1500 = vmatprep.subr.mxu0 0.0
        %1501 = vmatpush1.msra.mxu0 0.0
        %1502 = vmatprep.mubr.f32.mxu0 0.0
        %v1503 = vand.u32 %v344, 4294901760
        %v1504 = vsub.f32 %v344, %v1503
        %v1505 = vand.u32 %v1504, 4294901760
        %v1506 = vsub.f32 %v1504, %v1505
        %v1507 = vand.u32 %v1506, 4294901760
        %1508 = vmatmul.mubr.f32.gmra.mrb[0].mxu0 %v1507
        %v1509 = vpop.f32.mrb[0].mxu0
        %v1510 = vadd.f32 0.0, %v1509
        %v1511 = vpop.f32.mrb[0].mxu0
        %1512 = vmatprep.mubr.f32.mxu0 0.0
        %v1513 = vand.u32 %v345, 4294901760
        %v1514 = vsub.f32 %v345, %v1513
        %v1515 = vand.u32 %v1514, 4294901760
        %v1516 = vsub.f32 %v1514, %v1515
        %v1517 = vand.u32 %v1516, 4294901760
        %1518 = vmatmul.mubr.f32.gmra.mrb[0].mxu0 %v1517
        %v1519 = vpop.f32.mrb[0].mxu0
        %v1520 = vadd.f32 0.0, %v1519
        %v1521 = vpop.f32.mrb[0].mxu0
        %1522 = vmatprep.mubr.f32.mxu0 0.0
        %v1523 = vand.u32 %v346, 4294901760
        %v1524 = vsub.f32 %v346, %v1523
        %v1525 = vand.u32 %v1524, 4294901760
        %v1526 = vsub.f32 %v1524, %v1525
        %v1527 = vand.u32 %v1526, 4294901760
        %1528 = vmatmul.mubr.f32.gmra.mrb[0].mxu0 %v1527
        %v1529 = vpop.f32.mrb[0].mxu0
        %v1530 = vadd.f32 0.0, %v1529
        %v1531 = vpop.f32.mrb[0].mxu0
        %1532 = vmatprep.mubr.f32.mxu0 0.0
        %v1533 = vand.u32 %v347, 4294901760
        %v1534 = vsub.f32 %v347, %v1533
        %v1535 = vand.u32 %v1534, 4294901760
        %v1536 = vsub.f32 %v1534, %v1535
        %v1537 = vand.u32 %v1536, 4294901760
        %1538 = vmatmul.mubr.f32.gmra.mrb[0].mxu0 %v1537
        %v1539 = vpop.f32.mrb[0].mxu0
        %v1540 = vadd.f32 0.0, %v1539
        %v1541 = vpop.f32.mrb[0].mxu0
        %1542 = vmatprep.mubr.f32.mxu0 0.0
        %v1543 = vand.u32 %v348, 4294901760
        %v1544 = vsub.f32 %v348, %v1543
        %v1545 = vand.u32 %v1544, 4294901760
        %v1546 = vsub.f32 %v1544, %v1545
        %v1547 = vand.u32 %v1546, 4294901760
        %1548 = vmatmul.mubr.f32.gmra.mrb[0].mxu0 %v1547
        %v1549 = vpop.f32.mrb[0].mxu0
        %v1550 = vadd.f32 0.0, %v1549
        %v1551 = vpop.f32.mrb[0].mxu0
        %1552 = vmatprep.mubr.f32.mxu0 0.0
        %v1553 = vand.u32 %v349, 4294901760
        %v1554 = vsub.f32 %v349, %v1553
        %v1555 = vand.u32 %v1554, 4294901760
        %v1556 = vsub.f32 %v1554, %v1555
        %v1557 = vand.u32 %v1556, 4294901760
        %1558 = vmatmul.mubr.f32.gmra.mrb[0].mxu0 %v1557
        %v1559 = vpop.f32.mrb[0].mxu0
        %v1560 = vadd.f32 0.0, %v1559
        %v1561 = vpop.f32.mrb[0].mxu0
        %1562 = vmatprep.mubr.f32.mxu0 0.0
        %v1563 = vand.u32 %v350, 4294901760
        %v1564 = vsub.f32 %v350, %v1563
        %v1565 = vand.u32 %v1564, 4294901760
        %v1566 = vsub.f32 %v1564, %v1565
        %v1567 = vand.u32 %v1566, 4294901760
        %1568 = vmatmul.mubr.f32.gmra.mrb[0].mxu0 %v1567
        %v1569 = vpop.f32.mrb[0].mxu0
        %v1570 = vadd.f32 0.0, %v1569
        %v1571 = vpop.f32.mrb[0].mxu0
        %1572 = vmatprep.mubr.f32.mxu0 0.0
        %v1573 = vand.u32 %v351, 4294901760
        %v1574 = vsub.f32 %v351, %v1573
        %v1575 = vand.u32 %v1574, 4294901760
        %v1576 = vsub.f32 %v1574, %v1575
        %v1577 = vand.u32 %v1576, 4294901760
        %1578 = vmatmul.mubr.f32.gmra.mrb[0].mxu0 %v1577
        %v1579 = vpop.f32.mrb[0].mxu0
        %v1580 = vadd.f32 0.0, %v1579
        %v1581 = vpop.f32.mrb[0].mxu0
        %1582 = vmatprep.mubr.f32.mxu0 0.0
        %v1583 = vand.u32 %v352, 4294901760
        %v1584 = vsub.f32 %v352, %v1583
        %v1585 = vand.u32 %v1584, 4294901760
        %v1586 = vsub.f32 %v1584, %v1585
        %v1587 = vand.u32 %v1586, 4294901760
        %1588 = vmatmul.mubr.f32.gmra.mrb[0].mxu0 %v1587
        %v1589 = vpop.f32.mrb[0].mxu0
        %v1590 = vadd.f32 0.0, %v1589
        %v1591 = vpop.f32.mrb[0].mxu0
        %1592 = vmatprep.mubr.f32.mxu0 0.0
        %v1593 = vand.u32 %v353, 4294901760
        %v1594 = vsub.f32 %v353, %v1593
        %v1595 = vand.u32 %v1594, 4294901760
        %v1596 = vsub.f32 %v1594, %v1595
        %v1597 = vand.u32 %v1596, 4294901760
        %1598 = vmatmul.mubr.f32.gmra.mrb[0].mxu0 %v1597
        %v1599 = vpop.f32.mrb[0].mxu0
        %v1600 = vadd.f32 0.0, %v1599
        %v1601 = vpop.f32.mrb[0].mxu0
        %1602 = vmatprep.mubr.f32.mxu0 0.0
        %v1603 = vand.u32 %v354, 4294901760
        %v1604 = vsub.f32 %v354, %v1603
        %v1605 = vand.u32 %v1604, 4294901760
        %v1606 = vsub.f32 %v1604, %v1605
        %v1607 = vand.u32 %v1606, 4294901760
        %1608 = vmatmul.mubr.f32.gmra.mrb[0].mxu0 %v1607
        %v1609 = vpop.f32.mrb[0].mxu0
        %v1610 = vadd.f32 0.0, %v1609
        %v1611 = vpop.f32.mrb[0].mxu0
        %1612 = vmatprep.mubr.f32.mxu0 0.0
        %v1613 = vand.u32 %v355, 4294901760
        %v1614 = vsub.f32 %v355, %v1613
        %v1615 = vand.u32 %v1614, 4294901760
        %v1616 = vsub.f32 %v1614, %v1615
        %v1617 = vand.u32 %v1616, 4294901760
        %1618 = vmatmul.mubr.f32.gmra.mrb[0].mxu0 %v1617
        %v1619 = vpop.f32.mrb[0].mxu0
        %v1620 = vadd.f32 0.0, %v1619
        %v1621 = vpop.f32.mrb[0].mxu0
        %1622 = vmatprep.mubr.f32.mxu0 0.0
        %v1623 = vand.u32 %v356, 4294901760
        %v1624 = vsub.f32 %v356, %v1623
        %v1625 = vand.u32 %v1624, 4294901760
        %v1626 = vsub.f32 %v1624, %v1625
        %v1627 = vand.u32 %v1626, 4294901760
        %1628 = vmatmul.mubr.f32.gmra.mrb[0].mxu0 %v1627
        %v1629 = vpop.f32.mrb[0].mxu0
        %v1630 = vadd.f32 0.0, %v1629
        %v1631 = vpop.f32.mrb[0].mxu0
        %1632 = vmatprep.mubr.f32.mxu0 0.0
        %v1633 = vand.u32 %v357, 4294901760
        %v1634 = vsub.f32 %v357, %v1633
        %v1635 = vand.u32 %v1634, 4294901760
        %v1636 = vsub.f32 %v1634, %v1635
        %v1637 = vand.u32 %v1636, 4294901760
        %1638 = vmatmul.mubr.f32.gmra.mrb[0].mxu0 %v1637
        %v1639 = vpop.f32.mrb[0].mxu0
        %v1640 = vadd.f32 0.0, %v1639
        %v1641 = vpop.f32.mrb[0].mxu0
        %1642 = vmatprep.mubr.f32.mxu0 0.0
        %v1643 = vand.u32 %v358, 4294901760
        %v1644 = vsub.f32 %v358, %v1643
        %v1645 = vand.u32 %v1644, 4294901760
        %v1646 = vsub.f32 %v1644, %v1645
        %v1647 = vand.u32 %v1646, 4294901760
        %1648 = vmatmul.mubr.f32.gmra.mrb[0].mxu0 %v1647
        %v1649 = vpop.f32.mrb[0].mxu0
        %v1650 = vadd.f32 0.0, %v1649
        %v1651 = vpop.f32.mrb[0].mxu0
        %1652 = vmatprep.mubr.f32.mxu0 0.0
        %v1653 = vand.u32 %v359, 4294901760
        %v1654 = vsub.f32 %v359, %v1653
        %v1655 = vand.u32 %v1654, 4294901760
        %v1656 = vsub.f32 %v1654, %v1655
        %v1657 = vand.u32 %v1656, 4294901760
        %1658 = vmatmul.mubr.f32.gmra.mrb[0].mxu0 %v1657
        %v1659 = vpop.f32.mrb[0].mxu0
        %v1660 = vadd.f32 0.0, %v1659
        %v1661 = vpop.f32.mrb[0].mxu0
        %1662 = vdwg.mxu0
        %1663 = vmatprep.subr.mxu0 0.0
        %1664 = vmatpush1.msra.mxu0 0.0
        %1665 = vmatprep.subr.mxu0 0.0
        %1666 = vmatpush1.msra.mxu0 0.0
        %1667 = vmatprep.subr.mxu0 0.0
        %1668 = vmatpush1.msra.mxu0 0.0
        %1669 = vmatprep.subr.mxu0 0.0
        %1670 = vmatpush1.msra.mxu0 0.0
        %1671 = vmatprep.subr.mxu0 0.0
        %1672 = vmatpush1.msra.mxu0 0.0
        %1673 = vmatprep.subr.mxu0 0.0
        %1674 = vmatpush1.msra.mxu0 0.0
        %1675 = vmatprep.subr.mxu0 0.0
        %1676 = vmatpush1.msra.mxu0 0.0
        %1677 = vmatprep.subr.mxu0 0.0
        %1678 = vmatpush1.msra.mxu0 0.0
        %1679 = vmatprep.subr.mxu0 0.0
        %1680 = vmatpush1.msra.mxu0 0.0
        %1681 = vmatprep.subr.mxu0 0.0
        %1682 = vmatpush1.msra.mxu0 0.0
        %1683 = vmatprep.subr.mxu0 0.0
        %1684 = vmatpush1.msra.mxu0 0.0
        %1685 = vmatprep.subr.mxu0 0.0
        %1686 = vmatpush1.msra.mxu0 0.0
        %1687 = vmatprep.subr.mxu0 0.0
        %1688 = vmatpush1.msra.mxu0 0.0
        %1689 = vmatprep.subr.mxu0 0.0
        %1690 = vmatpush1.msra.mxu0 0.0
        %1691 = vmatprep.subr.mxu0 0.0
        %1692 = vmatpush1.msra.mxu0 0.0
        %1693 = vmatprep.subr.mxu0 0.0
        %1694 = vmatpush1.msra.mxu0 0.0
        %1695 = vmatprep.subr.mxu0 0.0
        %1696 = vmatpush1.msra.mxu0 0.0
        %1697 = vmatprep.subr.mxu0 0.0
        %1698 = vmatpush1.msra.mxu0 0.0
        %1699 = vmatprep.subr.mxu0 0.0
        %1700 = vmatpush1.msra.mxu0 0.0
        %1701 = vmatprep.subr.mxu0 0.0
        %1702 = vmatpush1.msra.mxu0 0.0
        %1703 = vmatprep.subr.mxu0 0.0
        %1704 = vmatpush1.msra.mxu0 0.0
        %1705 = vmatprep.subr.mxu0 0.0
        %1706 = vmatpush1.msra.mxu0 0.0
        %1707 = vmatprep.subr.mxu0 0.0
        %1708 = vmatpush1.msra.mxu0 0.0
        %1709 = vmatprep.subr.mxu0 0.0
        %1710 = vmatpush1.msra.mxu0 0.0
        %1711 = vmatprep.subr.mxu0 0.0
        %1712 = vmatpush1.msra.mxu0 0.0
        %1713 = vmatprep.subr.mxu0 0.0
        %1714 = vmatpush1.msra.mxu0 0.0
        %1715 = vmatprep.subr.mxu0 0.0
        %1716 = vmatpush1.msra.mxu0 0.0
        %1717 = vmatprep.subr.mxu0 0.0
        %1718 = vmatpush1.msra.mxu0 0.0
        %1719 = vmatprep.subr.mxu0 0.0
        %1720 = vmatpush1.msra.mxu0 0.0
        %1721 = vmatprep.subr.mxu0 0.0
        %1722 = vmatpush1.msra.mxu0 0.0
        %1723 = vmatprep.subr.mxu0 0.0
        %1724 = vmatpush1.msra.mxu0 0.0
        %1725 = vmatprep.subr.mxu0 0.0
        %1726 = vmatpush1.msra.mxu0 0.0
        %1727 = vmatprep.mubr.f32.mxu0 0.0
        %v1728 = vand.u32 %v344, 4294901760
        %1729 = vmatmul.mubr.f32.gmra.mrb[0].mxu0 %v1728
        %v1730 = vpop.f32.mrb[0].mxu0
        %v1731 = vadd.f32 %v1510, %v1730
        %v1732 = vpop.f32.mrb[0].mxu0
        %1733 = vmatprep.mubr.f32.mxu0 0.0
        %v1734 = vand.u32 %v345, 4294901760
        %1735 = vmatmul.mubr.f32.gmra.mrb[0].mxu0 %v1734
        %v1736 = vpop.f32.mrb[0].mxu0
        %v1737 = vadd.f32 %v1520, %v1736
        %v1738 = vpop.f32.mrb[0].mxu0
        %1739 = vmatprep.mubr.f32.mxu0 0.0
        %v1740 = vand.u32 %v346, 4294901760
        %1741 = vmatmul.mubr.f32.gmra.mrb[0].mxu0 %v1740
        %v1742 = vpop.f32.mrb[0].mxu0
        %v1743 = vadd.f32 %v1530, %v1742
        %v1744 = vpop.f32.mrb[0].mxu0
        %1745 = vmatprep.mubr.f32.mxu0 0.0
        %v1746 = vand.u32 %v347, 4294901760
        %1747 = vmatmul.mubr.f32.gmra.mrb[0].mxu0 %v1746
        %v1748 = vpop.f32.mrb[0].mxu0
        %v1749 = vadd.f32 %v1540, %v1748
        %v1750 = vpop.f32.mrb[0].mxu0
        %1751 = vmatprep.mubr.f32.mxu0 0.0
        %v1752 = vand.u32 %v348, 4294901760
        %1753 = vmatmul.mubr.f32.gmra.mrb[0].mxu0 %v1752
        %v1754 = vpop.f32.mrb[0].mxu0
        %v1755 = vadd.f32 %v1550, %v1754
        %v1756 = vpop.f32.mrb[0].mxu0
        %1757 = vmatprep.mubr.f32.mxu0 0.0
        %v1758 = vand.u32 %v349, 4294901760
        %1759 = vmatmul.mubr.f32.gmra.mrb[0].mxu0 %v1758
        %v1760 = vpop.f32.mrb[0].mxu0
        %v1761 = vadd.f32 %v1560, %v1760
        %v1762 = vpop.f32.mrb[0].mxu0
        %1763 = vmatprep.mubr.f32.mxu0 0.0
        %v1764 = vand.u32 %v350, 4294901760
        %1765 = vmatmul.mubr.f32.gmra.mrb[0].mxu0 %v1764
        %v1766 = vpop.f32.mrb[0].mxu0
        %v1767 = vadd.f32 %v1570, %v1766
        %v1768 = vpop.f32.mrb[0].mxu0
        %1769 = vmatprep.mubr.f32.mxu0 0.0
        %v1770 = vand.u32 %v351, 4294901760
        %1771 = vmatmul.mubr.f32.gmra.mrb[0].mxu0 %v1770
        %v1772 = vpop.f32.mrb[0].mxu0
        %v1773 = vadd.f32 %v1580, %v1772
        %v1774 = vpop.f32.mrb[0].mxu0
        %1775 = vmatprep.mubr.f32.mxu0 0.0
        %v1776 = vand.u32 %v352, 4294901760
        %1777 = vmatmul.mubr.f32.gmra.mrb[0].mxu0 %v1776
        %v1778 = vpop.f32.mrb[0].mxu0
        %v1779 = vadd.f32 %v1590, %v1778
        %v1780 = vpop.f32.mrb[0].mxu0
        %1781 = vmatprep.mubr.f32.mxu0 0.0
        %v1782 = vand.u32 %v353, 4294901760
        %1783 = vmatmul.mubr.f32.gmra.mrb[0].mxu0 %v1782
        %v1784 = vpop.f32.mrb[0].mxu0
        %v1785 = vadd.f32 %v1600, %v1784
        %v1786 = vpop.f32.mrb[0].mxu0
        %1787 = vmatprep.mubr.f32.mxu0 0.0
        %v1788 = vand.u32 %v354, 4294901760
        %1789 = vmatmul.mubr.f32.gmra.mrb[0].mxu0 %v1788
        %v1790 = vpop.f32.mrb[0].mxu0
        %v1791 = vadd.f32 %v1610, %v1790
        %v1792 = vpop.f32.mrb[0].mxu0
        %1793 = vmatprep.mubr.f32.mxu0 0.0
        %v1794 = vand.u32 %v355, 4294901760
        %1795 = vmatmul.mubr.f32.gmra.mrb[0].mxu0 %v1794
        %v1796 = vpop.f32.mrb[0].mxu0
        %v1797 = vadd.f32 %v1620, %v1796
        %v1798 = vpop.f32.mrb[0].mxu0
        %1799 = vmatprep.mubr.f32.mxu0 0.0
        %v1800 = vand.u32 %v356, 4294901760
        %1801 = vmatmul.mubr.f32.gmra.mrb[0].mxu0 %v1800
        %v1802 = vpop.f32.mrb[0].mxu0
        %v1803 = vadd.f32 %v1630, %v1802
        %v1804 = vpop.f32.mrb[0].mxu0
        %1805 = vmatprep.mubr.f32.mxu0 0.0
        %v1806 = vand.u32 %v357, 4294901760
        %1807 = vmatmul.mubr.f32.gmra.mrb[0].mxu0 %v1806
        %v1808 = vpop.f32.mrb[0].mxu0
        %v1809 = vadd.f32 %v1640, %v1808
        %v1810 = vpop.f32.mrb[0].mxu0
        %1811 = vmatprep.mubr.f32.mxu0 0.0
        %v1812 = vand.u32 %v358, 4294901760
        %1813 = vmatmul.mubr.f32.gmra.mrb[0].mxu0 %v1812
        %v1814 = vpop.f32.mrb[0].mxu0
        %v1815 = vadd.f32 %v1650, %v1814
        %v1816 = vpop.f32.mrb[0].mxu0
        %1817 = vmatprep.mubr.f32.mxu0 0.0
        %v1818 = vand.u32 %v359, 4294901760
        %1819 = vmatmul.mubr.f32.gmra.mrb[0].mxu0 %v1818
        %v1820 = vpop.f32.mrb[0].mxu0
        %v1821 = vadd.f32 %v1660, %v1820
        %v1822 = vpop.f32.mrb[0].mxu0
        %1823 = vdwg.mxu0
        %1824 = vmatprep.subr.mxu0 0.0
        %1825 = vmatpush1.msra.mxu0 0.0
        %1826 = vmatprep.subr.mxu0 0.0
        %1827 = vmatpush1.msra.mxu0 0.0
        %1828 = vmatprep.subr.mxu0 0.0
        %1829 = vmatpush1.msra.mxu0 0.0
        %1830 = vmatprep.subr.mxu0 0.0
        %1831 = vmatpush1.msra.mxu0 0.0
        %1832 = vmatprep.subr.mxu0 0.0
        %1833 = vmatpush1.msra.mxu0 0.0
        %1834 = vmatprep.subr.mxu0 0.0
        %1835 = vmatpush1.msra.mxu0 0.0
        %1836 = vmatprep.subr.mxu0 0.0
        %1837 = vmatpush1.msra.mxu0 0.0
        %1838 = vmatprep.subr.mxu0 0.0
        %1839 = vmatpush1.msra.mxu0 0.0
        %1840 = vmatprep.subr.mxu0 0.0
        %1841 = vmatpush1.msra.mxu0 0.0
        %1842 = vmatprep.subr.mxu0 0.0
        %1843 = vmatpush1.msra.mxu0 0.0
        %1844 = vmatprep.subr.mxu0 0.0
        %1845 = vmatpush1.msra.mxu0 0.0
        %1846 = vmatprep.subr.mxu0 0.0
        %1847 = vmatpush1.msra.mxu0 0.0
        %1848 = vmatprep.subr.mxu0 0.0
        %1849 = vmatpush1.msra.mxu0 0.0
        %1850 = vmatprep.subr.mxu0 0.0
        %1851 = vmatpush1.msra.mxu0 0.0
        %1852 = vmatprep.subr.mxu0 0.0
        %1853 = vmatpush1.msra.mxu0 0.0
        %1854 = vmatprep.subr.mxu0 0.0
        %1855 = vmatpush1.msra.mxu0 0.0
        %1856 = vmatprep.subr.mxu0 0.0
        %1857 = vmatpush1.msra.mxu0 0.0
        %1858 = vmatprep.subr.mxu0 0.0
        %1859 = vmatpush1.msra.mxu0 0.0
        %1860 = vmatprep.subr.mxu0 0.0
        %1861 = vmatpush1.msra.mxu0 0.0
        %1862 = vmatprep.subr.mxu0 0.0
        %1863 = vmatpush1.msra.mxu0 0.0
        %1864 = vmatprep.subr.mxu0 0.0
        %1865 = vmatpush1.msra.mxu0 0.0
        %1866 = vmatprep.subr.mxu0 0.0
        %1867 = vmatpush1.msra.mxu0 0.0
        %1868 = vmatprep.subr.mxu0 0.0
        %1869 = vmatpush1.msra.mxu0 0.0
        %1870 = vmatprep.subr.mxu0 0.0
        %1871 = vmatpush1.msra.mxu0 0.0
        %1872 = vmatprep.subr.mxu0 0.0
        %1873 = vmatpush1.msra.mxu0 0.0
        %1874 = vmatprep.subr.mxu0 0.0
        %1875 = vmatpush1.msra.mxu0 0.0
        %1876 = vmatprep.subr.mxu0 0.0
        %1877 = vmatpush1.msra.mxu0 0.0
        %1878 = vmatprep.subr.mxu0 0.0
        %1879 = vmatpush1.msra.mxu0 0.0
        %1880 = vmatprep.subr.mxu0 0.0
        %1881 = vmatpush1.msra.mxu0 0.0
        %1882 = vmatprep.subr.mxu0 0.0
        %1883 = vmatpush1.msra.mxu0 0.0
        %1884 = vmatprep.subr.mxu0 0.0
        %1885 = vmatpush1.msra.mxu0 0.0
        %1886 = vmatprep.subr.mxu0 0.0
        %1887 = vmatpush1.msra.mxu0 0.0
        %1888 = vmatprep.mubr.f32.mxu0 0.0
        %v1889 = vand.u32 %v344, 4294901760
        %v1890 = vsub.f32 %v344, %v1889
        %1891 = vmatmul.mubr.f32.gmra.mrb[0].mxu0 %v1890
        %v1892 = vpop.f32.mrb[0].mxu0
        %v1893 = vadd.f32 %v1731, %v1892
        %v1894 = vpop.f32.mrb[0].mxu0
        %1895 = vmatprep.mubr.f32.mxu0 0.0
        %v1896 = vand.u32 %v345, 4294901760
        %v1897 = vsub.f32 %v345, %v1896
        %1898 = vmatmul.mubr.f32.gmra.mrb[0].mxu0 %v1897
        %v1899 = vpop.f32.mrb[0].mxu0
        %v1900 = vadd.f32 %v1737, %v1899
        %v1901 = vpop.f32.mrb[0].mxu0
        %1902 = vmatprep.mubr.f32.mxu0 0.0
        %v1903 = vand.u32 %v346, 4294901760
        %v1904 = vsub.f32 %v346, %v1903
        %1905 = vmatmul.mubr.f32.gmra.mrb[0].mxu0 %v1904
        %v1906 = vpop.f32.mrb[0].mxu0
        %v1907 = vadd.f32 %v1743, %v1906
        %v1908 = vpop.f32.mrb[0].mxu0
        %1909 = vmatprep.mubr.f32.mxu0 0.0
        %v1910 = vand.u32 %v347, 4294901760
        %v1911 = vsub.f32 %v347, %v1910
        %1912 = vmatmul.mubr.f32.gmra.mrb[0].mxu0 %v1911
        %v1913 = vpop.f32.mrb[0].mxu0
        %v1914 = vadd.f32 %v1749, %v1913
        %v1915 = vpop.f32.mrb[0].mxu0
        %1916 = vmatprep.mubr.f32.mxu0 0.0
        %v1917 = vand.u32 %v348, 4294901760
        %v1918 = vsub.f32 %v348, %v1917
        %1919 = vmatmul.mubr.f32.gmra.mrb[0].mxu0 %v1918
        %v1920 = vpop.f32.mrb[0].mxu0
        %v1921 = vadd.f32 %v1755, %v1920
        %v1922 = vpop.f32.mrb[0].mxu0
        %1923 = vmatprep.mubr.f32.mxu0 0.0
        %v1924 = vand.u32 %v349, 4294901760
        %v1925 = vsub.f32 %v349, %v1924
        %1926 = vmatmul.mubr.f32.gmra.mrb[0].mxu0 %v1925
        %v1927 = vpop.f32.mrb[0].mxu0
        %v1928 = vadd.f32 %v1761, %v1927
        %v1929 = vpop.f32.mrb[0].mxu0
        %1930 = vmatprep.mubr.f32.mxu0 0.0
        %v1931 = vand.u32 %v350, 4294901760
        %v1932 = vsub.f32 %v350, %v1931
        %1933 = vmatmul.mubr.f32.gmra.mrb[0].mxu0 %v1932
        %v1934 = vpop.f32.mrb[0].mxu0
        %v1935 = vadd.f32 %v1767, %v1934
        %v1936 = vpop.f32.mrb[0].mxu0
        %1937 = vmatprep.mubr.f32.mxu0 0.0
        %v1938 = vand.u32 %v351, 4294901760
        %v1939 = vsub.f32 %v351, %v1938
        %1940 = vmatmul.mubr.f32.gmra.mrb[0].mxu0 %v1939
        %v1941 = vpop.f32.mrb[0].mxu0
        %v1942 = vadd.f32 %v1773, %v1941
        %v1943 = vpop.f32.mrb[0].mxu0
        %1944 = vmatprep.mubr.f32.mxu0 0.0
        %v1945 = vand.u32 %v352, 4294901760
        %v1946 = vsub.f32 %v352, %v1945
        %1947 = vmatmul.mubr.f32.gmra.mrb[0].mxu0 %v1946
        %v1948 = vpop.f32.mrb[0].mxu0
        %v1949 = vadd.f32 %v1779, %v1948
        %v1950 = vpop.f32.mrb[0].mxu0
        %1951 = vmatprep.mubr.f32.mxu0 0.0
        %v1952 = vand.u32 %v353, 4294901760
        %v1953 = vsub.f32 %v353, %v1952
        %1954 = vmatmul.mubr.f32.gmra.mrb[0].mxu0 %v1953
        %v1955 = vpop.f32.mrb[0].mxu0
        %v1956 = vadd.f32 %v1785, %v1955
        %v1957 = vpop.f32.mrb[0].mxu0
        %1958 = vmatprep.mubr.f32.mxu0 0.0
        %v1959 = vand.u32 %v354, 4294901760
        %v1960 = vsub.f32 %v354, %v1959
        %1961 = vmatmul.mubr.f32.gmra.mrb[0].mxu0 %v1960
        %v1962 = vpop.f32.mrb[0].mxu0
        %v1963 = vadd.f32 %v1791, %v1962
        %v1964 = vpop.f32.mrb[0].mxu0
        %1965 = vmatprep.mubr.f32.mxu0 0.0
        %v1966 = vand.u32 %v355, 4294901760
        %v1967 = vsub.f32 %v355, %v1966
        %1968 = vmatmul.mubr.f32.gmra.mrb[0].mxu0 %v1967
        %v1969 = vpop.f32.mrb[0].mxu0
        %v1970 = vadd.f32 %v1797, %v1969
        %v1971 = vpop.f32.mrb[0].mxu0
        %1972 = vmatprep.mubr.f32.mxu0 0.0
        %v1973 = vand.u32 %v356, 4294901760
        %v1974 = vsub.f32 %v356, %v1973
        %1975 = vmatmul.mubr.f32.gmra.mrb[0].mxu0 %v1974
        %v1976 = vpop.f32.mrb[0].mxu0
        %v1977 = vadd.f32 %v1803, %v1976
        %v1978 = vpop.f32.mrb[0].mxu0
        %1979 = vmatprep.mubr.f32.mxu0 0.0
        %v1980 = vand.u32 %v357, 4294901760
        %v1981 = vsub.f32 %v357, %v1980
        %1982 = vmatmul.mubr.f32.gmra.mrb[0].mxu0 %v1981
        %v1983 = vpop.f32.mrb[0].mxu0
        %v1984 = vadd.f32 %v1809, %v1983
        %v1985 = vpop.f32.mrb[0].mxu0
        %1986 = vmatprep.mubr.f32.mxu0 0.0
        %v1987 = vand.u32 %v358, 4294901760
        %v1988 = vsub.f32 %v358, %v1987
        %1989 = vmatmul.mubr.f32.gmra.mrb[0].mxu0 %v1988
        %v1990 = vpop.f32.mrb[0].mxu0
        %v1991 = vadd.f32 %v1815, %v1990
        %v1992 = vpop.f32.mrb[0].mxu0
        %1993 = vmatprep.mubr.f32.mxu0 0.0
        %v1994 = vand.u32 %v359, 4294901760
        %v1995 = vsub.f32 %v359, %v1994
        %1996 = vmatmul.mubr.f32.gmra.mrb[0].mxu0 %v1995
        %v1997 = vpop.f32.mrb[0].mxu0
        %v1998 = vadd.f32 %v1821, %v1997
        %v1999 = vpop.f32.mrb[0].mxu0
        %2000 = vdwg.mxu0
        %2001 = vmatprep.subr.mxu0 0.0
        %2002 = vmatpush1.msra.mxu0 1.0
        %2003 = vmatprep.subr.mxu0 0.0
        %2004 = vmatpush1.msra.mxu0 1.0
        %2005 = vmatprep.subr.mxu0 0.0
        %2006 = vmatpush1.msra.mxu0 1.0
        %2007 = vmatprep.subr.mxu0 0.0
        %2008 = vmatpush1.msra.mxu0 1.0
        %2009 = vmatprep.subr.mxu0 0.0
        %2010 = vmatpush1.msra.mxu0 1.0
        %2011 = vmatprep.subr.mxu0 0.0
        %2012 = vmatpush1.msra.mxu0 1.0
        %2013 = vmatprep.subr.mxu0 0.0
        %2014 = vmatpush1.msra.mxu0 1.0
        %2015 = vmatprep.subr.mxu0 0.0
        %2016 = vmatpush1.msra.mxu0 1.0
        %2017 = vmatprep.subr.mxu0 0.0
        %2018 = vmatpush1.msra.mxu0 1.0
        %2019 = vmatprep.subr.mxu0 0.0
        %2020 = vmatpush1.msra.mxu0 1.0
        %2021 = vmatprep.subr.mxu0 0.0
        %2022 = vmatpush1.msra.mxu0 1.0
        %2023 = vmatprep.subr.mxu0 0.0
        %2024 = vmatpush1.msra.mxu0 1.0
        %2025 = vmatprep.subr.mxu0 0.0
        %2026 = vmatpush1.msra.mxu0 1.0
        %2027 = vmatprep.subr.mxu0 0.0
        %2028 = vmatpush1.msra.mxu0 1.0
        %2029 = vmatprep.subr.mxu0 0.0
        %2030 = vmatpush1.msra.mxu0 1.0
        %2031 = vmatprep.subr.mxu0 0.0
        %2032 = vmatpush1.msra.mxu0 1.0
        %2033 = vmatprep.subr.mxu0 0.0
        %2034 = vmatpush1.msra.mxu0 0.0
        %2035 = vmatprep.subr.mxu0 0.0
        %2036 = vmatpush1.msra.mxu0 0.0
        %2037 = vmatprep.subr.mxu0 0.0
        %2038 = vmatpush1.msra.mxu0 0.0
        %2039 = vmatprep.subr.mxu0 0.0
        %2040 = vmatpush1.msra.mxu0 0.0
        %2041 = vmatprep.subr.mxu0 0.0
        %2042 = vmatpush1.msra.mxu0 0.0
        %2043 = vmatprep.subr.mxu0 0.0
        %2044 = vmatpush1.msra.mxu0 0.0
        %2045 = vmatprep.subr.mxu0 0.0
        %2046 = vmatpush1.msra.mxu0 0.0
        %2047 = vmatprep.subr.mxu0 0.0
        %2048 = vmatpush1.msra.mxu0 0.0
        %2049 = vmatprep.subr.mxu0 0.0
        %2050 = vmatpush1.msra.mxu0 0.0
        %2051 = vmatprep.subr.mxu0 0.0
        %2052 = vmatpush1.msra.mxu0 0.0
        %2053 = vmatprep.subr.mxu0 0.0
        %2054 = vmatpush1.msra.mxu0 0.0
        %2055 = vmatprep.subr.mxu0 0.0
        %2056 = vmatpush1.msra.mxu0 0.0
        %2057 = vmatprep.subr.mxu0 0.0
        %2058 = vmatpush1.msra.mxu0 0.0
        %2059 = vmatprep.subr.mxu0 0.0
        %2060 = vmatpush1.msra.mxu0 0.0
        %2061 = vmatprep.subr.mxu0 0.0
        %2062 = vmatpush1.msra.mxu0 0.0
        %2063 = vmatprep.subr.mxu0 0.0
        %2064 = vmatpush1.msra.mxu0 0.0
        %2065 = vmatprep.mubr.f32.mxu0 0.0
        %v2066 = vand.u32 %v344, 4294901760
        %v2067 = vsub.f32 %v344, %v2066
        %v2068 = vand.u32 %v2067, 4294901760
        %2069 = vmatmul.mubr.f32.gmra.mrb[0].mxu0 %v2068
        %v2070 = vpop.f32.mrb[0].mxu0
        %v2071 = vadd.f32 %v1893, %v2070
        %v2072 = vpop.f32.mrb[0].mxu0
        %2073 = vmatprep.mubr.f32.mxu0 0.0
        %v2074 = vand.u32 %v345, 4294901760
        %v2075 = vsub.f32 %v345, %v2074
        %v2076 = vand.u32 %v2075, 4294901760
        %2077 = vmatmul.mubr.f32.gmra.mrb[0].mxu0 %v2076
        %v2078 = vpop.f32.mrb[0].mxu0
        %v2079 = vadd.f32 %v1900, %v2078
        %v2080 = vpop.f32.mrb[0].mxu0
        %2081 = vmatprep.mubr.f32.mxu0 0.0
        %v2082 = vand.u32 %v346, 4294901760
        %v2083 = vsub.f32 %v346, %v2082
        %v2084 = vand.u32 %v2083, 4294901760
        %2085 = vmatmul.mubr.f32.gmra.mrb[0].mxu0 %v2084
        %v2086 = vpop.f32.mrb[0].mxu0
        %v2087 = vadd.f32 %v1907, %v2086
        %v2088 = vpop.f32.mrb[0].mxu0
        %2089 = vmatprep.mubr.f32.mxu0 0.0
        %v2090 = vand.u32 %v347, 4294901760
        %v2091 = vsub.f32 %v347, %v2090
        %v2092 = vand.u32 %v2091, 4294901760
        %2093 = vmatmul.mubr.f32.gmra.mrb[0].mxu0 %v2092
        %v2094 = vpop.f32.mrb[0].mxu0
        %v2095 = vadd.f32 %v1914, %v2094
        %v2096 = vpop.f32.mrb[0].mxu0
        %2097 = vmatprep.mubr.f32.mxu0 0.0
        %v2098 = vand.u32 %v348, 4294901760
        %v2099 = vsub.f32 %v348, %v2098
        %v2100 = vand.u32 %v2099, 4294901760
        %2101 = vmatmul.mubr.f32.gmra.mrb[0].mxu0 %v2100
        %v2102 = vpop.f32.mrb[0].mxu0
        %v2103 = vadd.f32 %v1921, %v2102
        %v2104 = vpop.f32.mrb[0].mxu0
        %2105 = vmatprep.mubr.f32.mxu0 0.0
        %v2106 = vand.u32 %v349, 4294901760
        %v2107 = vsub.f32 %v349, %v2106
        %v2108 = vand.u32 %v2107, 4294901760
        %2109 = vmatmul.mubr.f32.gmra.mrb[0].mxu0 %v2108
        %v2110 = vpop.f32.mrb[0].mxu0
        %v2111 = vadd.f32 %v1928, %v2110
        %v2112 = vpop.f32.mrb[0].mxu0
        %2113 = vmatprep.mubr.f32.mxu0 0.0
        %v2114 = vand.u32 %v350, 4294901760
        %v2115 = vsub.f32 %v350, %v2114
        %v2116 = vand.u32 %v2115, 4294901760
        %2117 = vmatmul.mubr.f32.gmra.mrb[0].mxu0 %v2116
        %v2118 = vpop.f32.mrb[0].mxu0
        %v2119 = vadd.f32 %v1935, %v2118
        %v2120 = vpop.f32.mrb[0].mxu0
        %2121 = vmatprep.mubr.f32.mxu0 0.0
        %v2122 = vand.u32 %v351, 4294901760
        %v2123 = vsub.f32 %v351, %v2122
        %v2124 = vand.u32 %v2123, 4294901760
        %2125 = vmatmul.mubr.f32.gmra.mrb[0].mxu0 %v2124
        %v2126 = vpop.f32.mrb[0].mxu0
        %v2127 = vadd.f32 %v1942, %v2126
        %v2128 = vpop.f32.mrb[0].mxu0
        %2129 = vmatprep.mubr.f32.mxu0 0.0
        %v2130 = vand.u32 %v352, 4294901760
        %v2131 = vsub.f32 %v352, %v2130
        %v2132 = vand.u32 %v2131, 4294901760
        %2133 = vmatmul.mubr.f32.gmra.mrb[0].mxu0 %v2132
        %v2134 = vpop.f32.mrb[0].mxu0
        %v2135 = vadd.f32 %v1949, %v2134
        %v2136 = vpop.f32.mrb[0].mxu0
        %2137 = vmatprep.mubr.f32.mxu0 0.0
        %v2138 = vand.u32 %v353, 4294901760
        %v2139 = vsub.f32 %v353, %v2138
        %v2140 = vand.u32 %v2139, 4294901760
        %2141 = vmatmul.mubr.f32.gmra.mrb[0].mxu0 %v2140
        %v2142 = vpop.f32.mrb[0].mxu0
        %v2143 = vadd.f32 %v1956, %v2142
        %v2144 = vpop.f32.mrb[0].mxu0
        %2145 = vmatprep.mubr.f32.mxu0 0.0
        %v2146 = vand.u32 %v354, 4294901760
        %v2147 = vsub.f32 %v354, %v2146
        %v2148 = vand.u32 %v2147, 4294901760
        %2149 = vmatmul.mubr.f32.gmra.mrb[0].mxu0 %v2148
        %v2150 = vpop.f32.mrb[0].mxu0
        %v2151 = vadd.f32 %v1963, %v2150
        %v2152 = vpop.f32.mrb[0].mxu0
        %2153 = vmatprep.mubr.f32.mxu0 0.0
        %v2154 = vand.u32 %v355, 4294901760
        %v2155 = vsub.f32 %v355, %v2154
        %v2156 = vand.u32 %v2155, 4294901760
        %2157 = vmatmul.mubr.f32.gmra.mrb[0].mxu0 %v2156
        %v2158 = vpop.f32.mrb[0].mxu0
        %v2159 = vadd.f32 %v1970, %v2158
        %v2160 = vpop.f32.mrb[0].mxu0
        %2161 = vmatprep.mubr.f32.mxu0 0.0
        %v2162 = vand.u32 %v356, 4294901760
        %v2163 = vsub.f32 %v356, %v2162
        %v2164 = vand.u32 %v2163, 4294901760
        %2165 = vmatmul.mubr.f32.gmra.mrb[0].mxu0 %v2164
        %v2166 = vpop.f32.mrb[0].mxu0
        %v2167 = vadd.f32 %v1977, %v2166
        %v2168 = vpop.f32.mrb[0].mxu0
        %2169 = vmatprep.mubr.f32.mxu0 0.0
        %v2170 = vand.u32 %v357, 4294901760
        %v2171 = vsub.f32 %v357, %v2170
        %v2172 = vand.u32 %v2171, 4294901760
        %2173 = vmatmul.mubr.f32.gmra.mrb[0].mxu0 %v2172
        %v2174 = vpop.f32.mrb[0].mxu0
        %v2175 = vadd.f32 %v1984, %v2174
        %v2176 = vpop.f32.mrb[0].mxu0
        %2177 = vmatprep.mubr.f32.mxu0 0.0
        %v2178 = vand.u32 %v358, 4294901760
        %v2179 = vsub.f32 %v358, %v2178
        %v2180 = vand.u32 %v2179, 4294901760
        %2181 = vmatmul.mubr.f32.gmra.mrb[0].mxu0 %v2180
        %v2182 = vpop.f32.mrb[0].mxu0
        %v2183 = vadd.f32 %v1991, %v2182
        %v2184 = vpop.f32.mrb[0].mxu0
        %2185 = vmatprep.mubr.f32.mxu0 0.0
        %v2186 = vand.u32 %v359, 4294901760
        %v2187 = vsub.f32 %v359, %v2186
        %v2188 = vand.u32 %v2187, 4294901760
        %2189 = vmatmul.mubr.f32.gmra.mrb[0].mxu0 %v2188
        %v2190 = vpop.f32.mrb[0].mxu0
        %v2191 = vadd.f32 %v1998, %v2190
        %v2192 = vpop.f32.mrb[0].mxu0
        %2193 = vdwg.mxu0
        %2194 = vmatprep.subr.mxu0 0.0
        %2195 = vmatpush1.msra.mxu0 0.0
        %2196 = vmatprep.subr.mxu0 0.0
        %2197 = vmatpush1.msra.mxu0 0.0
        %2198 = vmatprep.subr.mxu0 0.0
        %2199 = vmatpush1.msra.mxu0 0.0
        %2200 = vmatprep.subr.mxu0 0.0
        %2201 = vmatpush1.msra.mxu0 0.0
        %2202 = vmatprep.subr.mxu0 0.0
        %2203 = vmatpush1.msra.mxu0 0.0
        %2204 = vmatprep.subr.mxu0 0.0
        %2205 = vmatpush1.msra.mxu0 0.0
        %2206 = vmatprep.subr.mxu0 0.0
        %2207 = vmatpush1.msra.mxu0 0.0
        %2208 = vmatprep.subr.mxu0 0.0
        %2209 = vmatpush1.msra.mxu0 0.0
        %2210 = vmatprep.subr.mxu0 0.0
        %2211 = vmatpush1.msra.mxu0 0.0
        %2212 = vmatprep.subr.mxu0 0.0
        %2213 = vmatpush1.msra.mxu0 0.0
        %2214 = vmatprep.subr.mxu0 0.0
        %2215 = vmatpush1.msra.mxu0 0.0
        %2216 = vmatprep.subr.mxu0 0.0
        %2217 = vmatpush1.msra.mxu0 0.0
        %2218 = vmatprep.subr.mxu0 0.0
        %2219 = vmatpush1.msra.mxu0 0.0
        %2220 = vmatprep.subr.mxu0 0.0
        %2221 = vmatpush1.msra.mxu0 0.0
        %2222 = vmatprep.subr.mxu0 0.0
        %2223 = vmatpush1.msra.mxu0 0.0
        %2224 = vmatprep.subr.mxu0 0.0
        %2225 = vmatpush1.msra.mxu0 0.0
        %2226 = vmatprep.subr.mxu0 0.0
        %2227 = vmatpush1.msra.mxu0 0.0
        %2228 = vmatprep.subr.mxu0 0.0
        %2229 = vmatpush1.msra.mxu0 0.0
        %2230 = vmatprep.subr.mxu0 0.0
        %2231 = vmatpush1.msra.mxu0 0.0
        %2232 = vmatprep.subr.mxu0 0.0
        %2233 = vmatpush1.msra.mxu0 0.0
        %2234 = vmatprep.subr.mxu0 0.0
        %2235 = vmatpush1.msra.mxu0 0.0
        %2236 = vmatprep.subr.mxu0 0.0
        %2237 = vmatpush1.msra.mxu0 0.0
        %2238 = vmatprep.subr.mxu0 0.0
        %2239 = vmatpush1.msra.mxu0 0.0
        %2240 = vmatprep.subr.mxu0 0.0
        %2241 = vmatpush1.msra.mxu0 0.0
        %2242 = vmatprep.subr.mxu0 0.0
        %2243 = vmatpush1.msra.mxu0 0.0
        %2244 = vmatprep.subr.mxu0 0.0
        %2245 = vmatpush1.msra.mxu0 0.0
        %2246 = vmatprep.subr.mxu0 0.0
        %2247 = vmatpush1.msra.mxu0 0.0
        %2248 = vmatprep.subr.mxu0 0.0
        %2249 = vmatpush1.msra.mxu0 0.0
        %2250 = vmatprep.subr.mxu0 0.0
        %2251 = vmatpush1.msra.mxu0 0.0
        %2252 = vmatprep.subr.mxu0 0.0
        %2253 = vmatpush1.msra.mxu0 0.0
        %2254 = vmatprep.subr.mxu0 0.0
        %2255 = vmatpush1.msra.mxu0 0.0
        %2256 = vmatprep.subr.mxu0 0.0
        %2257 = vmatpush1.msra.mxu0 0.0
        %2258 = vmatprep.mubr.f32.mxu0 0.0
        %v2259 = vand.u32 %v344, 4294901760
        %2260 = vmatmul.mubr.f32.gmra.mrb[0].mxu0 %v2259
        %v2261 = vpop.f32.mrb[0].mxu0
        %v2262 = vadd.f32 %v2071, %v2261
        %v2263 = vpop.f32.mrb[0].mxu0
        %2264 = vmatprep.mubr.f32.mxu0 0.0
        %v2265 = vand.u32 %v345, 4294901760
        %2266 = vmatmul.mubr.f32.gmra.mrb[0].mxu0 %v2265
        %v2267 = vpop.f32.mrb[0].mxu0
        %v2268 = vadd.f32 %v2079, %v2267
        %v2269 = vpop.f32.mrb[0].mxu0
        %2270 = vmatprep.mubr.f32.mxu0 0.0
        %v2271 = vand.u32 %v346, 4294901760
        %2272 = vmatmul.mubr.f32.gmra.mrb[0].mxu0 %v2271
        %v2273 = vpop.f32.mrb[0].mxu0
        %v2274 = vadd.f32 %v2087, %v2273
        %v2275 = vpop.f32.mrb[0].mxu0
        %2276 = vmatprep.mubr.f32.mxu0 0.0
        %v2277 = vand.u32 %v347, 4294901760
        %2278 = vmatmul.mubr.f32.gmra.mrb[0].mxu0 %v2277
        %v2279 = vpop.f32.mrb[0].mxu0
        %v2280 = vadd.f32 %v2095, %v2279
        %v2281 = vpop.f32.mrb[0].mxu0
        %2282 = vmatprep.mubr.f32.mxu0 0.0
        %v2283 = vand.u32 %v348, 4294901760
        %2284 = vmatmul.mubr.f32.gmra.mrb[0].mxu0 %v2283
        %v2285 = vpop.f32.mrb[0].mxu0
        %v2286 = vadd.f32 %v2103, %v2285
        %v2287 = vpop.f32.mrb[0].mxu0
        %2288 = vmatprep.mubr.f32.mxu0 0.0
        %v2289 = vand.u32 %v349, 4294901760
        %2290 = vmatmul.mubr.f32.gmra.mrb[0].mxu0 %v2289
        %v2291 = vpop.f32.mrb[0].mxu0
        %v2292 = vadd.f32 %v2111, %v2291
        %v2293 = vpop.f32.mrb[0].mxu0
        %2294 = vmatprep.mubr.f32.mxu0 0.0
        %v2295 = vand.u32 %v350, 4294901760
        %2296 = vmatmul.mubr.f32.gmra.mrb[0].mxu0 %v2295
        %v2297 = vpop.f32.mrb[0].mxu0
        %v2298 = vadd.f32 %v2119, %v2297
        %v2299 = vpop.f32.mrb[0].mxu0
        %2300 = vmatprep.mubr.f32.mxu0 0.0
        %v2301 = vand.u32 %v351, 4294901760
        %2302 = vmatmul.mubr.f32.gmra.mrb[0].mxu0 %v2301
        %v2303 = vpop.f32.mrb[0].mxu0
        %v2304 = vadd.f32 %v2127, %v2303
        %v2305 = vpop.f32.mrb[0].mxu0
        %2306 = vmatprep.mubr.f32.mxu0 0.0
        %v2307 = vand.u32 %v352, 4294901760
        %2308 = vmatmul.mubr.f32.gmra.mrb[0].mxu0 %v2307
        %v2309 = vpop.f32.mrb[0].mxu0
        %v2310 = vadd.f32 %v2135, %v2309
        %v2311 = vpop.f32.mrb[0].mxu0
        %2312 = vmatprep.mubr.f32.mxu0 0.0
        %v2313 = vand.u32 %v353, 4294901760
        %2314 = vmatmul.mubr.f32.gmra.mrb[0].mxu0 %v2313
        %v2315 = vpop.f32.mrb[0].mxu0
        %v2316 = vadd.f32 %v2143, %v2315
        %v2317 = vpop.f32.mrb[0].mxu0
        %2318 = vmatprep.mubr.f32.mxu0 0.0
        %v2319 = vand.u32 %v354, 4294901760
        %2320 = vmatmul.mubr.f32.gmra.mrb[0].mxu0 %v2319
        %v2321 = vpop.f32.mrb[0].mxu0
        %v2322 = vadd.f32 %v2151, %v2321
        %v2323 = vpop.f32.mrb[0].mxu0
        %2324 = vmatprep.mubr.f32.mxu0 0.0
        %v2325 = vand.u32 %v355, 4294901760
        %2326 = vmatmul.mubr.f32.gmra.mrb[0].mxu0 %v2325
        %v2327 = vpop.f32.mrb[0].mxu0
        %v2328 = vadd.f32 %v2159, %v2327
        %v2329 = vpop.f32.mrb[0].mxu0
        %2330 = vmatprep.mubr.f32.mxu0 0.0
        %v2331 = vand.u32 %v356, 4294901760
        %2332 = vmatmul.mubr.f32.gmra.mrb[0].mxu0 %v2331
        %v2333 = vpop.f32.mrb[0].mxu0
        %v2334 = vadd.f32 %v2167, %v2333
        %v2335 = vpop.f32.mrb[0].mxu0
        %2336 = vmatprep.mubr.f32.mxu0 0.0
        %v2337 = vand.u32 %v357, 4294901760
        %2338 = vmatmul.mubr.f32.gmra.mrb[0].mxu0 %v2337
        %v2339 = vpop.f32.mrb[0].mxu0
        %v2340 = vadd.f32 %v2175, %v2339
        %v2341 = vpop.f32.mrb[0].mxu0
        %2342 = vmatprep.mubr.f32.mxu0 0.0
        %v2343 = vand.u32 %v358, 4294901760
        %2344 = vmatmul.mubr.f32.gmra.mrb[0].mxu0 %v2343
        %v2345 = vpop.f32.mrb[0].mxu0
        %v2346 = vadd.f32 %v2183, %v2345
        %v2347 = vpop.f32.mrb[0].mxu0
        %2348 = vmatprep.mubr.f32.mxu0 0.0
        %v2349 = vand.u32 %v359, 4294901760
        %2350 = vmatmul.mubr.f32.gmra.mrb[0].mxu0 %v2349
        %v2351 = vpop.f32.mrb[0].mxu0
        %v2352 = vadd.f32 %v2191, %v2351
        %v2353 = vpop.f32.mrb[0].mxu0
        %2354 = vdwg.mxu0
        %2355 = vmatprep.subr.mxu0 0.0
        %2356 = vmatpush1.msra.mxu0 1.0
        %2357 = vmatprep.subr.mxu0 0.0
        %2358 = vmatpush1.msra.mxu0 1.0
        %2359 = vmatprep.subr.mxu0 0.0
        %2360 = vmatpush1.msra.mxu0 1.0
        %2361 = vmatprep.subr.mxu0 0.0
        %2362 = vmatpush1.msra.mxu0 1.0
        %2363 = vmatprep.subr.mxu0 0.0
        %2364 = vmatpush1.msra.mxu0 1.0
        %2365 = vmatprep.subr.mxu0 0.0
        %2366 = vmatpush1.msra.mxu0 1.0
        %2367 = vmatprep.subr.mxu0 0.0
        %2368 = vmatpush1.msra.mxu0 1.0
        %2369 = vmatprep.subr.mxu0 0.0
        %2370 = vmatpush1.msra.mxu0 1.0
        %2371 = vmatprep.subr.mxu0 0.0
        %2372 = vmatpush1.msra.mxu0 1.0
        %2373 = vmatprep.subr.mxu0 0.0
        %2374 = vmatpush1.msra.mxu0 1.0
        %2375 = vmatprep.subr.mxu0 0.0
        %2376 = vmatpush1.msra.mxu0 1.0
        %2377 = vmatprep.subr.mxu0 0.0
        %2378 = vmatpush1.msra.mxu0 1.0
        %2379 = vmatprep.subr.mxu0 0.0
        %2380 = vmatpush1.msra.mxu0 1.0
        %2381 = vmatprep.subr.mxu0 0.0
        %2382 = vmatpush1.msra.mxu0 1.0
        %2383 = vmatprep.subr.mxu0 0.0
        %2384 = vmatpush1.msra.mxu0 1.0
        %2385 = vmatprep.subr.mxu0 0.0
        %2386 = vmatpush1.msra.mxu0 1.0
        %2387 = vmatprep.subr.mxu0 0.0
        %2388 = vmatpush1.msra.mxu0 0.0
        %2389 = vmatprep.subr.mxu0 0.0
        %2390 = vmatpush1.msra.mxu0 0.0
        %2391 = vmatprep.subr.mxu0 0.0
        %2392 = vmatpush1.msra.mxu0 0.0
        %2393 = vmatprep.subr.mxu0 0.0
        %2394 = vmatpush1.msra.mxu0 0.0
        %2395 = vmatprep.subr.mxu0 0.0
        %2396 = vmatpush1.msra.mxu0 0.0
        %2397 = vmatprep.subr.mxu0 0.0
        %2398 = vmatpush1.msra.mxu0 0.0
        %2399 = vmatprep.subr.mxu0 0.0
        %2400 = vmatpush1.msra.mxu0 0.0
        %2401 = vmatprep.subr.mxu0 0.0
        %2402 = vmatpush1.msra.mxu0 0.0
        %2403 = vmatprep.subr.mxu0 0.0
        %2404 = vmatpush1.msra.mxu0 0.0
        %2405 = vmatprep.subr.mxu0 0.0
        %2406 = vmatpush1.msra.mxu0 0.0
        %2407 = vmatprep.subr.mxu0 0.0
        %2408 = vmatpush1.msra.mxu0 0.0
        %2409 = vmatprep.subr.mxu0 0.0
        %2410 = vmatpush1.msra.mxu0 0.0
        %2411 = vmatprep.subr.mxu0 0.0
        %2412 = vmatpush1.msra.mxu0 0.0
        %2413 = vmatprep.subr.mxu0 0.0
        %2414 = vmatpush1.msra.mxu0 0.0
        %2415 = vmatprep.subr.mxu0 0.0
        %2416 = vmatpush1.msra.mxu0 0.0
        %2417 = vmatprep.subr.mxu0 0.0
        %2418 = vmatpush1.msra.mxu0 0.0
        %2419 = vmatprep.mubr.f32.mxu0 0.0
        %v2420 = vand.u32 %v344, 4294901760
        %2421 = vmatmul.mubr.f32.gmra.mrb[0].mxu0 %v2420
        %v2422 = vpop.f32.mrb[0].mxu0
        %v2423 = vadd.f32 %v2262, %v2422
        %v2424 = vpop.f32.mrb[0].mxu0
        %2425 = vmatprep.mubr.f32.mxu0 0.0
        %v2426 = vand.u32 %v345, 4294901760
        %2427 = vmatmul.mubr.f32.gmra.mrb[0].mxu0 %v2426
        %v2428 = vpop.f32.mrb[0].mxu0
        %v2429 = vadd.f32 %v2268, %v2428
        %v2430 = vpop.f32.mrb[0].mxu0
        %2431 = vmatprep.mubr.f32.mxu0 0.0
        %v2432 = vand.u32 %v346, 4294901760
        %2433 = vmatmul.mubr.f32.gmra.mrb[0].mxu0 %v2432
        %v2434 = vpop.f32.mrb[0].mxu0
        %v2435 = vadd.f32 %v2274, %v2434
        %v2436 = vpop.f32.mrb[0].mxu0
        %2437 = vmatprep.mubr.f32.mxu0 0.0
        %v2438 = vand.u32 %v347, 4294901760
        %2439 = vmatmul.mubr.f32.gmra.mrb[0].mxu0 %v2438
        %v2440 = vpop.f32.mrb[0].mxu0
        %v2441 = vadd.f32 %v2280, %v2440
        %v2442 = vpop.f32.mrb[0].mxu0
        %2443 = vmatprep.mubr.f32.mxu0 0.0
        %v2444 = vand.u32 %v348, 4294901760
        %2445 = vmatmul.mubr.f32.gmra.mrb[0].mxu0 %v2444
        %v2446 = vpop.f32.mrb[0].mxu0
        %v2447 = vadd.f32 %v2286, %v2446
        %v2448 = vpop.f32.mrb[0].mxu0
        %2449 = vmatprep.mubr.f32.mxu0 0.0
        %v2450 = vand.u32 %v349, 4294901760
        %2451 = vmatmul.mubr.f32.gmra.mrb[0].mxu0 %v2450
        %v2452 = vpop.f32.mrb[0].mxu0
        %v2453 = vadd.f32 %v2292, %v2452
        %v2454 = vpop.f32.mrb[0].mxu0
        %2455 = vmatprep.mubr.f32.mxu0 0.0
        %v2456 = vand.u32 %v350, 4294901760
        %2457 = vmatmul.mubr.f32.gmra.mrb[0].mxu0 %v2456
        %v2458 = vpop.f32.mrb[0].mxu0
        %v2459 = vadd.f32 %v2298, %v2458
        %v2460 = vpop.f32.mrb[0].mxu0
        %2461 = vmatprep.mubr.f32.mxu0 0.0
        %v2462 = vand.u32 %v351, 4294901760
        %2463 = vmatmul.mubr.f32.gmra.mrb[0].mxu0 %v2462
        %v2464 = vpop.f32.mrb[0].mxu0
        %v2465 = vadd.f32 %v2304, %v2464
        %v2466 = vpop.f32.mrb[0].mxu0
        %2467 = vmatprep.mubr.f32.mxu0 0.0
        %v2468 = vand.u32 %v352, 4294901760
        %2469 = vmatmul.mubr.f32.gmra.mrb[0].mxu0 %v2468
        %v2470 = vpop.f32.mrb[0].mxu0
        %v2471 = vadd.f32 %v2310, %v2470
        %v2472 = vpop.f32.mrb[0].mxu0
        %2473 = vmatprep.mubr.f32.mxu0 0.0
        %v2474 = vand.u32 %v353, 4294901760
        %2475 = vmatmul.mubr.f32.gmra.mrb[0].mxu0 %v2474
        %v2476 = vpop.f32.mrb[0].mxu0
        %v2477 = vadd.f32 %v2316, %v2476
        %v2478 = vpop.f32.mrb[0].mxu0
        %2479 = vmatprep.mubr.f32.mxu0 0.0
        %v2480 = vand.u32 %v354, 4294901760
        %2481 = vmatmul.mubr.f32.gmra.mrb[0].mxu0 %v2480
        %v2482 = vpop.f32.mrb[0].mxu0
        %v2483 = vadd.f32 %v2322, %v2482
        %v2484 = vpop.f32.mrb[0].mxu0
        %2485 = vmatprep.mubr.f32.mxu0 0.0
        %v2486 = vand.u32 %v355, 4294901760
        %2487 = vmatmul.mubr.f32.gmra.mrb[0].mxu0 %v2486
        %v2488 = vpop.f32.mrb[0].mxu0
        %v2489 = vadd.f32 %v2328, %v2488
        %v2490 = vpop.f32.mrb[0].mxu0
        %2491 = vmatprep.mubr.f32.mxu0 0.0
        %v2492 = vand.u32 %v356, 4294901760
        %2493 = vmatmul.mubr.f32.gmra.mrb[0].mxu0 %v2492
        %v2494 = vpop.f32.mrb[0].mxu0
        %v2495 = vadd.f32 %v2334, %v2494
        %v2496 = vpop.f32.mrb[0].mxu0
        %2497 = vmatprep.mubr.f32.mxu0 0.0
        %v2498 = vand.u32 %v357, 4294901760
        %2499 = vmatmul.mubr.f32.gmra.mrb[0].mxu0 %v2498
        %v2500 = vpop.f32.mrb[0].mxu0
        %v2501 = vadd.f32 %v2340, %v2500
        %v2502 = vpop.f32.mrb[0].mxu0
        %2503 = vmatprep.mubr.f32.mxu0 0.0
        %v2504 = vand.u32 %v358, 4294901760
        %2505 = vmatmul.mubr.f32.gmra.mrb[0].mxu0 %v2504
        %v2506 = vpop.f32.mrb[0].mxu0
        %v2507 = vadd.f32 %v2346, %v2506
        %v2508 = vpop.f32.mrb[0].mxu0
        %2509 = vmatprep.mubr.f32.mxu0 0.0
        %v2510 = vand.u32 %v359, 4294901760
        %2511 = vmatmul.mubr.f32.gmra.mrb[0].mxu0 %v2510
        %v2512 = vpop.f32.mrb[0].mxu0
        %v2513 = vadd.f32 %v2352, %v2512
        %v2514 = vpop.f32.mrb[0].mxu0
        %2515 = vdwg.mxu0
        %v2516 = vlog2.pop %v1345
        %v2517 = vmul.f32 %v2516, 0.6931472
        %v2518 = vlog2.pop %v1351
        %v2519 = vmul.f32 %v2518, 0.6931472
        %v2520 = vlog2.pop %v1357
        %v2521 = vmul.f32 %v2520, 0.6931472
        %v2522 = vlog2.pop %v1363
        %v2523 = vmul.f32 %v2522, 0.6931472
        %v2524 = vlog2.pop %v1369
        %v2525 = vmul.f32 %v2524, 0.6931472
        %v2526 = vlog2.pop %v1375
        %v2527 = vmul.f32 %v2526, 0.6931472
        %v2528 = vlog2.pop %v1381
        %v2529 = vmul.f32 %v2528, 0.6931472
        %v2530 = vlog2.pop %v1387
        %v2531 = vmul.f32 %v2530, 0.6931472
        %v2532 = vlog2.pop %v1393
        %v2533 = vmul.f32 %v2532, 0.6931472
        %v2534 = vlog2.pop %v1399
        %v2535 = vmul.f32 %v2534, 0.6931472
        %v2536 = vlog2.pop %v1405
        %v2537 = vmul.f32 %v2536, 0.6931472
        %v2538 = vlog2.pop %v1411
        %v2539 = vmul.f32 %v2538, 0.6931472
        %v2540 = vlog2.pop %v1417
        %v2541 = vmul.f32 %v2540, 0.6931472
        %v2542 = vlog2.pop %v1423
        %v2543 = vmul.f32 %v2542, 0.6931472
        %v2544 = vlog2.pop %v1429
        %v2545 = vmul.f32 %v2544, 0.6931472
        %v2546 = vlog2.pop %v1435
        %v2547 = vmul.f32 %v2546, 0.6931472
        %v2548 = vsub.f32 %v2517, %v2423
        %v2549 = vsub.f32 %v2519, %v2429
        %v2550 = vsub.f32 %v2521, %v2435
        %v2551 = vsub.f32 %v2523, %v2441
        %v2552 = vsub.f32 %v2525, %v2447
        %v2553 = vsub.f32 %v2527, %v2453
        %v2554 = vsub.f32 %v2529, %v2459
        %v2555 = vsub.f32 %v2531, %v2465
        %v2556 = vsub.f32 %v2533, %v2471
        %v2557 = vsub.f32 %v2535, %v2477
        %v2558 = vsub.f32 %v2537, %v2483
        %v2559 = vsub.f32 %v2539, %v2489
        %v2560 = vsub.f32 %v2541, %v2495
        %v2561 = vsub.f32 %v2543, %v2501
        %v2562 = vsub.f32 %v2545, %v2507
        %v2563 = vsub.f32 %v2547, %v2513
        %v2564 = vsub.f32 0.0, %v2548
        %v2565 = vsub.f32 0.0, %v2549
        %v2566 = vsub.f32 0.0, %v2550
        %v2567 = vsub.f32 0.0, %v2551
        %v2568 = vsub.f32 0.0, %v2552
        %v2569 = vsub.f32 0.0, %v2553
        %v2570 = vsub.f32 0.0, %v2554
        %v2571 = vsub.f32 0.0, %v2555
        %v2572 = vsub.f32 0.0, %v2556
        %v2573 = vsub.f32 0.0, %v2557
        %v2574 = vsub.f32 0.0, %v2558
        %v2575 = vsub.f32 0.0, %v2559
        %v2576 = vsub.f32 0.0, %v2560
        %v2577 = vsub.f32 0.0, %v2561
        %v2578 = vsub.f32 0.0, %v2562
        %v2579 = vsub.f32 0.0, %v2563
        %v2580 = vmul.f32 %v2564, 1.442695
        %v2581 = vpow.pop %v2580
        %v2582 = vmul.f32 %v2565, 1.442695
        %v2583 = vpow.pop %v2582
        %v2584 = vmul.f32 %v2566, 1.442695
        %v2585 = vpow.pop %v2584
        %v2586 = vmul.f32 %v2567, 1.442695
        %v2587 = vpow.pop %v2586
        %v2588 = vmul.f32 %v2568, 1.442695
        %v2589 = vpow.pop %v2588
        %v2590 = vmul.f32 %v2569, 1.442695
        %v2591 = vpow.pop %v2590
        %v2592 = vmul.f32 %v2570, 1.442695
        %v2593 = vpow.pop %v2592
        %v2594 = vmul.f32 %v2571, 1.442695
        %v2595 = vpow.pop %v2594
        %v2596 = vmul.f32 %v2572, 1.442695
        %v2597 = vpow.pop %v2596
        %v2598 = vmul.f32 %v2573, 1.442695
        %v2599 = vpow.pop %v2598
        %v2600 = vmul.f32 %v2574, 1.442695
        %v2601 = vpow.pop %v2600
        %v2602 = vmul.f32 %v2575, 1.442695
        %v2603 = vpow.pop %v2602
        %v2604 = vmul.f32 %v2576, 1.442695
        %v2605 = vpow.pop %v2604
        %v2606 = vmul.f32 %v2577, 1.442695
        %v2607 = vpow.pop %v2606
        %v2608 = vmul.f32 %v2578, 1.442695
        %v2609 = vpow.pop %v2608
        %v2610 = vmul.f32 %v2579, 1.442695
        %v2611 = vpow.pop %v2610
        %v2612 = vsub.f32 1.0, %v2581
        %v2613 = vsub.f32 1.0, %v2583
        %v2614 = vsub.f32 1.0, %v2585
        %v2615 = vsub.f32 1.0, %v2587
        %v2616 = vsub.f32 1.0, %v2589
        %v2617 = vsub.f32 1.0, %v2591
        %v2618 = vsub.f32 1.0, %v2593
        %v2619 = vsub.f32 1.0, %v2595
        %v2620 = vsub.f32 1.0, %v2597
        %v2621 = vsub.f32 1.0, %v2599
        %v2622 = vsub.f32 1.0, %v2601
        %v2623 = vsub.f32 1.0, %v2603
        %v2624 = vsub.f32 1.0, %v2605
        %v2625 = vsub.f32 1.0, %v2607
        %v2626 = vsub.f32 1.0, %v2609
        %v2627 = vsub.f32 1.0, %v2611
        %v2628 = vmul.f32 %v2612, %v2612
        %v2629 = vmul.f32 %v2613, %v2613
        %v2630 = vmul.f32 %v2614, %v2614
        %v2631 = vmul.f32 %v2615, %v2615
        %v2632 = vmul.f32 %v2616, %v2616
        %v2633 = vmul.f32 %v2617, %v2617
        %v2634 = vmul.f32 %v2618, %v2618
        %v2635 = vmul.f32 %v2619, %v2619
        %v2636 = vmul.f32 %v2620, %v2620
        %v2637 = vmul.f32 %v2621, %v2621
        %v2638 = vmul.f32 %v2622, %v2622
        %v2639 = vmul.f32 %v2623, %v2623
        %v2640 = vmul.f32 %v2624, %v2624
        %v2641 = vmul.f32 %v2625, %v2625
        %v2642 = vmul.f32 %v2626, %v2626
        %v2643 = vmul.f32 %v2627, %v2627
        %v2644 = vmul.f32 %v2628, %v2548
        %v2645 = vmul.f32 %v2629, %v2549
        %v2646 = vmul.f32 %v2630, %v2550
        %v2647 = vmul.f32 %v2631, %v2551
        %v2648 = vmul.f32 %v2632, %v2552
        %v2649 = vmul.f32 %v2633, %v2553
        %v2650 = vmul.f32 %v2634, %v2554
        %v2651 = vmul.f32 %v2635, %v2555
        %v2652 = vmul.f32 %v2636, %v2556
        %v2653 = vmul.f32 %v2637, %v2557
        %v2654 = vmul.f32 %v2638, %v2558
        %v2655 = vmul.f32 %v2639, %v2559
        %v2656 = vmul.f32 %v2640, %v2560
        %v2657 = vmul.f32 %v2641, %v2561
        %v2658 = vmul.f32 %v2642, %v2562
        %v2659 = vmul.f32 %v2643, %v2563
        %s2660 = smul.u32 %s16, 128
        %v2661 = vlaneseq
        %v2662 = vshrl.u32 %v2661, 7
        %v2663 = vadd.s32 %v2662, 8
        %v2664 = vadd.s32 %v2662, 16
        %v2665 = vadd.s32 %v2662, 24
        %v2666 = vadd.s32 %v2662, 32
        %v2667 = vadd.s32 %v2662, 40
        %v2668 = vadd.s32 %v2662, 48
        %v2669 = vadd.s32 %v2662, 56
        %v2670 = vadd.s32 %v2662, 64
        %v2671 = vadd.s32 %v2662, 72
        %v2672 = vadd.s32 %v2662, 80
        %v2673 = vadd.s32 %v2662, 88
        %v2674 = vadd.s32 %v2662, 96
        %v2675 = vadd.s32 %v2662, 104
        %v2676 = vadd.s32 %v2662, 112
        %v2677 = vadd.s32 %v2662, 120
        %v2678 = vstv %s2660
        %v2679 = vadd.s32 %v2678, %v2662
        %v2680 = vadd.s32 %v2678, %v2663
        %v2681 = vadd.s32 %v2678, %v2664
        %v2682 = vadd.s32 %v2678, %v2665
        %v2683 = vadd.s32 %v2678, %v2666
        %v2684 = vadd.s32 %v2678, %v2667
        %v2685 = vadd.s32 %v2678, %v2668
        %v2686 = vadd.s32 %v2678, %v2669
        %v2687 = vadd.s32 %v2678, %v2670
        %v2688 = vadd.s32 %v2678, %v2671
        %v2689 = vadd.s32 %v2678, %v2672
        %v2690 = vadd.s32 %v2678, %v2673
        %v2691 = vadd.s32 %v2678, %v2674
        %v2692 = vadd.s32 %v2678, %v2675
        %v2693 = vadd.s32 %v2678, %v2676
        %v2694 = vadd.s32 %v2678, %v2677
        %vm2695 = vcmp.lt.s32.totalorder %v2679, 512
        %vm2696 = vcmp.lt.s32.totalorder %v2680, 512
        %vm2697 = vcmp.lt.s32.totalorder %v2681, 512
        %vm2698 = vcmp.lt.s32.totalorder %v2682, 512
        %vm2699 = vcmp.lt.s32.totalorder %v2683, 512
        %vm2700 = vcmp.lt.s32.totalorder %v2684, 512
        %vm2701 = vcmp.lt.s32.totalorder %v2685, 512
        %vm2702 = vcmp.lt.s32.totalorder %v2686, 512
        %vm2703 = vcmp.lt.s32.totalorder %v2687, 512
        %vm2704 = vcmp.lt.s32.totalorder %v2688, 512
        %vm2705 = vcmp.lt.s32.totalorder %v2689, 512
        %vm2706 = vcmp.lt.s32.totalorder %v2690, 512
        %vm2707 = vcmp.lt.s32.totalorder %v2691, 512
        %vm2708 = vcmp.lt.s32.totalorder %v2692, 512
        %vm2709 = vcmp.lt.s32.totalorder %v2693, 512
        %vm2710 = vcmp.lt.s32.totalorder %v2694, 512
        %v2711 = vsel %vm2695, %v2644, 0.0
        %v2712 = vsel %vm2696, %v2645, 0.0
        %v2713 = vsel %vm2697, %v2646, 0.0
        %v2714 = vsel %vm2698, %v2647, 0.0
        %v2715 = vsel %vm2699, %v2648, 0.0
        %v2716 = vsel %vm2700, %v2649, 0.0
        %v2717 = vsel %vm2701, %v2650, 0.0
        %v2718 = vsel %vm2702, %v2651, 0.0
        %v2719 = vsel %vm2703, %v2652, 0.0
        %v2720 = vsel %vm2704, %v2653, 0.0
        %v2721 = vsel %vm2705, %v2654, 0.0
        %v2722 = vsel %vm2706, %v2655, 0.0
        %v2723 = vsel %vm2707, %v2656, 0.0
        %v2724 = vsel %vm2708, %v2657, 0.0
        %v2725 = vsel %vm2709, %v2658, 0.0
        %v2726 = vsel %vm2710, %v2659, 0.0
        %vm2727 = vcmask 7168
        %v2728 = vsel %vm2727, %v2711, 0.0
        %v2729 = vsel %vm2727, %v2712, 0.0
        %v2730 = vadd.f32 %v2728, %v2729
        %v2731 = vsel %vm2727, %v2713, 0.0
        %v2732 = vadd.f32 %v2730, %v2731
        %v2733 = vsel %vm2727, %v2714, 0.0
        %v2734 = vadd.f32 %v2732, %v2733
        %v2735 = vsel %vm2727, %v2715, 0.0
        %v2736 = vadd.f32 %v2734, %v2735
        %v2737 = vsel %vm2727, %v2716, 0.0
        %v2738 = vadd.f32 %v2736, %v2737
        %v2739 = vsel %vm2727, %v2717, 0.0
        %v2740 = vadd.f32 %v2738, %v2739
        %v2741 = vsel %vm2727, %v2718, 0.0
        %v2742 = vadd.f32 %v2740, %v2741
        %v2743 = vsel %vm2727, %v2719, 0.0
        %v2744 = vadd.f32 %v2742, %v2743
        %v2745 = vsel %vm2727, %v2720, 0.0
        %v2746 = vadd.f32 %v2744, %v2745
        %v2747 = vsel %vm2727, %v2721, 0.0
        %v2748 = vadd.f32 %v2746, %v2747
        %v2749 = vsel %vm2727, %v2722, 0.0
        %v2750 = vadd.f32 %v2748, %v2749
        %v2751 = vsel %vm2727, %v2723, 0.0
        %v2752 = vadd.f32 %v2750, %v2751
        %v2753 = vsel %vm2727, %v2724, 0.0
        %v2754 = vadd.f32 %v2752, %v2753
        %v2755 = vsel %vm2727, %v2725, 0.0
        %v2756 = vadd.f32 %v2754, %v2755
        %v2757 = vsel %vm2727, %v2726, 0.0
        %v2758 = vadd.f32 %v2756, %v2757
        %2759 = vadd.xlane.f32.xlu0 %v2758
        %v2760 = vpop.xlane.xlu0 %2759
        %v2761 = vrot.slane %v2760, 4
        %v2762 = vadd.f32 %v2760, %v2761
        %v2763 = vrot.slane %v2762, 2
        %v2764 = vadd.f32 %v2762, %v2763
        %v2765 = vrot.slane %v2764, 1
        %v2766 = vadd.f32 %v2764, %v2765
        %s2767 = vtos %v2766
        %v2768 = vstv %s2767
        %2769 = vst [vmem:[%s153] sm:$0xff] %v2768
        %s2770 = sand.u32 %s76, 1
        %s2771 = scalar_lea.sflag [#allocation3], %s2770
        %s2772 = sand.u32 %s76, 1
        %s2773 = smul.addr %s2772, 8
        %s2774 = scalar_lea.vmem [#allocation2], %s2773
        // Predicated region
        $region29: #{tpu_custom_call.1} parent=27 // pred_check
          %p2775 = pneg %p86
        $region30: #{tpu_custom_call.1} parent=27 // pred_check_branch
          %2777 = sbr.rel (%p2775) target = $region32
        $region31: #{tpu_custom_call.1} parent=27 // pred_region
          %s2779 = ssub.s32 128, 128
          %2780 = vsyncadd %s2771, %s2779
          %s2781 = smul.addr %s16, 128
          %s2782 = scalar_lea.hbm %s2, %s2781
          %s2784 = sshll.u32 %s2774, 4
          %s2785 = int_to_ptr.vmem [resolvable:$true] %s2784
          %2787 = dma.vmem_to_hbm [thread:$0]  %s2785, 128, %s2782, %s2771
        $region32: #{tpu_custom_call.1} parent=27 // pred_fallthru
          _
      $region28: #{tpu_custom_call.1} parent=5 // pred_fallthru
        _
      %p2788 = scmp.le.s32.totalorder 2, %s11
      // Predicated region
      $region33: #{tpu_custom_call.1} parent=5 // pred_check
        %p2789 = pneg %p2788
      $region34: #{tpu_custom_call.1} parent=5 // pred_check_branch
        %2791 = sbr.rel (%p2789) target = $region36
      $region35: #{tpu_custom_call.1} parent=5 // pred_region
        %s2792 = ssub.s32 %s11, 2
        // Predicated region
        $region37: #{tpu_custom_call.1} parent=35 // pred_check
          %p2793 = pneg %p92
        $region38: #{tpu_custom_call.1} parent=35 // pred_check_branch
          %2795 = sbr.rel (%p2793) target = $region40
        $region39: #{tpu_custom_call.1} parent=35 // pred_region
          %s2796 = sand.u32 %s77, 1
          %s2797 = scalar_lea.sflag [#allocation3], %s2796
          %s2798 = sand.u32 %s77, 1
          %s2799 = smul.addr %s2798, 8
          %s2800 = scalar_lea.vmem [#allocation2], %s2799
          %2801 = dma.done %s2797, 128
        $region40: #{tpu_custom_call.1} parent=35 // pred_fallthru
          _
      $region36: #{tpu_custom_call.1} parent=5 // pred_fallthru
        _
    $region6: #{tpu_custom_call.1} parent=1 // loop_footer
      %s15 = sadd.s32 1, %s11
    $region7: #{tpu_custom_call.1} parent=1 // loop_footer_branch
      %10 = sbr.rel target = $region3
    $region8: #{tpu_custom_call.1} parent=1 // loop_exit
      _
    %2802 = vsyncpa [#allocation3], 1
    %s2803 = scalar_lea.sflag [#allocation3], 1
    %2804 = vsyncpa %s2803, 1

</llo_original>
